<compile_context>
chip_gen: v5e
topology: v5e:2x2
jax: 0.10.0
libtpu: 0.0.40
codegen_flags: <defaults>
</compile_context>

<pallas_src>
import jax
import jax.numpy as jnp
from jax import lax
from jax.experimental import pallas as pl
from jax.experimental.pallas import tpu as pltpu

# bf16 for MXU operands; accumulation stays f32 via preferred_element_type.
MXU_DTYPE = jnp.bfloat16


def _pick_tile_n(n, requested):
    """Largest batch tile <= requested that evenly divides n (fallback: n)."""
    for t in (requested, 128, 64, 32, 16, 8):
        if t <= n and n % t == 0:
            return t
    return n


# ----------------------------------------------------------------------------
# Shared in-kernel math
# ----------------------------------------------------------------------------
def _masked_counts(ids, mask, vocab):
    """ids/mask: [N, S] -> [N, V] f32 mask-weighted one-hot counts.

    counts[n, v] = sum_s (mask[n, s] / valid_len[n]) * (ids[n, s] == v)
    so that counts @ embedding == masked *mean* pooling of embedding rows.
    Single fused select (no separate one-hot cast / multiply pass); the
    reciprocal of valid_len is folded into the select weight (EUP slot).
    valid_len is clamped to >=1 (reference would NaN on all-masked rows).
    """
    N, S = ids.shape
    valid = jnp.maximum(jnp.sum(mask, axis=1, keepdims=True), 1.0)       # [N,1]
    w = mask * pl.reciprocal(valid, approx=True)                         # [N,S]
    iota_v = lax.broadcasted_iota(jnp.int32, (N, S, vocab), 2)           # [N,S,V]
    weighted = jnp.where(ids[..., None] == iota_v, w[..., None], 0.0)    # [N,S,V]
    return jnp.sum(weighted, axis=1)                                     # [N,V]


def _encode_tile(counts, emb_bf16, w_bf16, b_f32):
    """counts [M, V] f32 -> ELU(Linear(mean-pooled embeddings)) [M, D] f32."""
    avg = jnp.dot(counts.astype(MXU_DTYPE), emb_bf16,
                  preferred_element_type=jnp.float32)                    # [M,H]
    y = jnp.dot(avg.astype(MXU_DTYPE), w_bf16,
                preferred_element_type=jnp.float32) + b_f32              # [M,D]
    # ELU (alpha=1) in f32; clamp exp arg so the dead branch stays finite.
    return jnp.where(y > 0.0, y, jnp.exp(jnp.minimum(y, 0.0)) - 1.0)


# ----------------------------------------------------------------------------
# Fused forward: encode both streams (batch-tiled) + contrastive CE loss
# ----------------------------------------------------------------------------
def fused_forward_kernel(idq_ref, mq_ref, idk_ref, mk_ref, emb_ref, w_ref,
                         b_ref, out_ref, cnt_ref, enc_ref):
    i = pl.program_id(0)
    t = idq_ref.shape[0]                 # batch tile size
    B = enc_ref.shape[0] // 2            # full batch
    V = emb_ref.shape[0]

    # q and k tiles share one matmul chain through the [2t, V] counts scratch.
    cnt_ref[0:t, :] = _masked_counts(idq_ref[...], mq_ref[...], V)
    cnt_ref[t:2 * t, :] = _masked_counts(idk_ref[...], mk_ref[...], V)
    enc = _encode_tile(cnt_ref[...], emb_ref[...], w_ref[...], b_ref[...])  # [2t,D]

    row = pl.multiple_of(i * t, t)
    enc_ref[pl.ds(row, t), :] = enc[0:t, :]            # q rows [0, B)
    enc_ref[pl.ds(B + row, t), :] = enc[t:2 * t, :]    # k rows [B, 2B)

    @pl.when(i == pl.num_programs(0) - 1)
    def _():
        q = enc_ref[0:B, :]                                              # [B,D]
        k = enc_ref[B:2 * B, :]                                          # [B,D]
        # score = q @ k^T, contracting last dims (no XLU transpose of k).
        score = lax.dot_general(q, k, (((1,), (1,)), ((), ())),
                                preferred_element_type=jnp.float32)      # [B,B]
        # cross_entropy(score, arange(B)) == mean(logsumexp(row) - diag), f32.
        m = jnp.max(score, axis=-1, keepdims=True)
        lse = m + jnp.log(jnp.sum(jnp.exp(score - m), axis=-1, keepdims=True))
        r = lax.broadcasted_iota(jnp.int32, score.shape, 0)
        c = lax.broadcasted_iota(jnp.int32, score.shape, 1)
        diag = jnp.sum(jnp.where(r == c, score, 0.0), axis=-1, keepdims=True)
        out_ref[0, 0] = jnp.mean(lse - diag)


def fused_forward(ids_q, mask_q, ids_k, mask_k, emb_bf16, w_bf16, b, *, tile_n=8):
    B, S = ids_q.shape
    V, H = emb_bf16.shape
    D = w_bf16.shape[1]
    t = _pick_tile_n(B, tile_n)

    tile_spec = pl.BlockSpec((t, S), lambda i: (i, 0))

    loss = pl.pallas_call(
        fused_forward_kernel,
        out_shape=jax.ShapeDtypeStruct((1, 1), jnp.float32),
        grid=(B // t,),
        in_specs=[
            tile_spec, tile_spec, tile_spec, tile_spec,
            pl.BlockSpec((V, H), lambda i: (0, 0)),     # emb: resident
            pl.BlockSpec((H, D), lambda i: (0, 0)),     # Linear weight: resident
            pl.BlockSpec((1, D), lambda i: (0, 0)),     # bias: resident
        ],
        out_specs=pl.BlockSpec((1, 1), lambda i: (0, 0),
                               memory_space=pltpu.MemorySpace.SMEM),
        scratch_shapes=[
            pltpu.VMEM((2 * t, V), jnp.float32),        # per-tile shared counts
            pltpu.VMEM((2 * B, D), jnp.float32),        # q rows 0..B, k rows B..2B
        ],
        compiler_params=pltpu.CompilerParams(
            # Last step reads encodings from every step (BxB loss couples all
            # rows), so the batch-tile axis is 'arbitrary', not 'parallel'.
            dimension_semantics=("arbitrary",),
        ),
    )(ids_q.astype(jnp.int32), mask_q.astype(jnp.float32),
      ids_k.astype(jnp.int32), mask_k.astype(jnp.float32),
      emb_bf16, w_bf16, b)
    return loss[0, 0]


# ----------------------------------------------------------------------------
# Standalone encoder (== infer_q / infer_k), batch-tiled parallel grid
# ----------------------------------------------------------------------------
def encode_kernel(ids_ref, mask_ref, emb_ref, w_ref, b_ref, out_ref):
    counts = _masked_counts(ids_ref[...], mask_ref[...], emb_ref.shape[0])
    out_ref[...] = _encode_tile(counts, emb_ref[...], w_ref[...], b_ref[...])


def encode(ids, mask, emb_bf16, w_bf16, b, *, tile_n=8):
    N, S = ids.shape
    V, H = emb_bf16.shape
    D = w_bf16.shape[1]
    t = _pick_tile_n(N, tile_n)
    return pl.pallas_call(
        encode_kernel,
        out_shape=jax.ShapeDtypeStruct((N, D), jnp.float32),
        grid=(N // t,),
        in_specs=[
            pl.BlockSpec((t, S), lambda i: (i, 0)),
            pl.BlockSpec((t, S), lambda i: (i, 0)),
            pl.BlockSpec((V, H), lambda i: (0, 0)),
            pl.BlockSpec((H, D), lambda i: (0, 0)),
            pl.BlockSpec((1, D), lambda i: (0, 0)),
        ],
        out_specs=pl.BlockSpec((t, D), lambda i: (i, 0)),
        compiler_params=pltpu.CompilerParams(
            # Batch tiles are independent: shard across v7x's 2 TensorCores.
            dimension_semantics=("parallel",),
        ),
    )(ids.astype(jnp.int32), mask.astype(jnp.float32), emb_bf16, w_bf16, b)


# ----------------------------------------------------------------------------
# TextEncoder wrapper (key_bert=None path: q and k share the same encoder)
# ----------------------------------------------------------------------------
class TextEncoderPallas:
    def __init__(self, key, vocab_size=64, hidden_size=128, output_hidden_size=128,
                 encode_tile_n=8):
        k_emb, k_w, k_b = jax.random.split(key, 3)
        # Stub for the injected BERT: deterministic embedding table [V, H].
        self.embedding = jax.random.normal(
            k_emb, (vocab_size, hidden_size), jnp.float32) * 0.02
        # nn.Linear(hidden_size, output_hidden_size): weight stored as [H, D].
        self.w = jax.random.normal(
            k_w, (hidden_size, output_hidden_size), jnp.float32) * 0.02
        self.b = jax.random.normal(
            k_b, (1, output_hidden_size), jnp.float32) * 0.02
        # bf16 copies fed to the MXU (halves emb/w DMA); f32 masters kept above.
        self.emb_mxu = self.embedding.astype(MXU_DTYPE)
        self.w_mxu = self.w.astype(MXU_DTYPE)
        self.tile_n = encode_tile_n

    def infer_q(self, input_ids, attention_mask):
        return encode(input_ids, attention_mask, self.emb_mxu, self.w_mxu,
                      self.b, tile_n=self.tile_n)

    def infer_k(self, input_ids, attention_mask):
        # key_bert is None -> identical to infer_q (shared weights)
        return self.infer_q(input_ids, attention_mask)

    def __call__(self, input_id_query, attention_mask_query,
                 input_id_key, attention_mask_key):
        return fused_forward(input_id_query, attention_mask_query,
                             input_id_key, attention_mask_key,
                             self.emb_mxu, self.w_mxu, self.b,
                             tile_n=self.tile_n)


# ----------------------------------------------------------------------------
# Pure-JAX f32 reference for correctness checks
# ----------------------------------------------------------------------------
def reference_encode(model, ids, mask):
    h = jnp.take(model.embedding, ids, axis=0)              # [B, S, H]
    m = mask.astype(jnp.float32)
    valid = jnp.sum(m, axis=1, keepdims=True)
    avg = jnp.sum(h * m[..., None], axis=1) / valid
    y = avg @ model.w + model.b
    return jnp.where(y > 0.0, y, jnp.exp(jnp.minimum(y, 0.0)) - 1.0)


def reference_forward(model, ids_q, mask_q, ids_k, mask_k):
    q = reference_encode(model, ids_q, mask_q)
    k = reference_encode(model, ids_k, mask_k)
    score = q @ k.T
    logz = jax.scipy.special.logsumexp(score, axis=-1)
    diag = jnp.diagonal(score)
    return jnp.mean(logz - diag)


if __name__ == "__main__":
    B, S, VOCAB, H, D = 16, 16, 64, 128, 128

    key = jax.random.PRNGKey(0)
    k_model, k_idq, k_idk, k_mq, k_mk = jax.random.split(key, 5)

    model = TextEncoderPallas(k_model, vocab_size=VOCAB,
                              hidden_size=H, output_hidden_size=D,
                              encode_tile_n=8)   # tile 8 -> multi-step grids

    input_id_query = jax.random.randint(k_idq, (B, S), 0, VOCAB, jnp.int32)
    input_id_key = jax.random.randint(k_idk, (B, S), 0, VOCAB, jnp.int32)

    # random attention masks; guarantee at least one valid token per row
    mask_q = (jax.random.uniform(k_mq, (B, S)) > 0.3).astype(jnp.int32)
    mask_k = (jax.random.uniform(k_mk, (B, S)) > 0.3).astype(jnp.int32)
    mask_q = mask_q.at[:, 0].set(1)
    mask_k = mask_k.at[:, 0].set(1)

    # Fused forward: both encoders + retrieval loss in ONE pallas_call.
    loss = model(input_id_query, mask_q, input_id_key, mask_k)
    loss = jax.block_until_ready(loss)
    ref = reference_forward(model, input_id_query, mask_q, input_id_key, mask_k)
    # Tolerances account for bf16 MXU operands + approx reciprocal (f32 accum).
    assert jnp.allclose(loss, ref, atol=2e-3, rtol=1e-2), (loss, ref)

    # Standalone encoder path (infer_q), batch-tiled grid of 2 steps.
    q_pal = jax.block_until_ready(model.infer_q(input_id_query, mask_q))
    q_ref = reference_encode(model, input_id_query, mask_q)
    assert jnp.allclose(q_pal, q_ref, atol=2e-3, rtol=1e-2)

    print("KERNEL_OK")
</pallas_src>

<mosaic_0001>
module attributes {stable_mosaic.version = 11 : i64} {
  func.func @fused_forward_kernel(%arg0: i32, %arg1: memref<8x16xi32, #tpu.memory_space<vmem>>, %arg2: memref<8x16xf32, #tpu.memory_space<vmem>>, %arg3: memref<8x16xi32, #tpu.memory_space<vmem>>, %arg4: memref<8x16xf32, #tpu.memory_space<vmem>>, %arg5: memref<64x128xbf16, #tpu.memory_space<vmem>>, %arg6: memref<128x128xbf16, #tpu.memory_space<vmem>>, %arg7: memref<1x128xf32, #tpu.memory_space<vmem>>, %arg8: memref<1x1xf32, #tpu.memory_space<smem>>, %arg9: memref<16x64xf32, #tpu.memory_space<vmem>>, %arg10: memref<32x128xf32, #tpu.memory_space<vmem>>) attributes {dimension_semantics = [#tpu.dimension_semantics<arbitrary>], iteration_bounds = array<i64: 2>, scalar_prefetch = 0 : i64, scratch_operands = 2 : i64, tpu.core_type = #tpu.core_type<tc>, window_params = [{transform_indices = @transform_0, window_bounds = array<i64: 8, 16>}, {transform_indices = @transform_1, window_bounds = array<i64: 8, 16>}, {transform_indices = @transform_2, window_bounds = array<i64: 8, 16>}, {transform_indices = @transform_3, window_bounds = array<i64: 8, 16>}, {pipeline_mode = #tpu.pipeline_mode<synchronous>, transform_indices = @transform_4, window_bounds = array<i64: 64, 128>}, {pipeline_mode = #tpu.pipeline_mode<synchronous>, transform_indices = @transform_5, window_bounds = array<i64: 128, 128>}, {pipeline_mode = #tpu.pipeline_mode<synchronous>, transform_indices = @transform_6, window_bounds = array<i64: 1, 128>}, {transform_indices = @transform_7, window_bounds = array<i64: 1, 1>}]} {
    %c0 = arith.constant 0 : index
    %c0_0 = arith.constant 0 : index
    %0 = vector.load %arg1[%c0, %c0_0] : memref<8x16xi32, #tpu.memory_space<vmem>>, vector<8x16xi32>
    %c0_1 = arith.constant 0 : index
    %c0_2 = arith.constant 0 : index
    %1 = vector.load %arg2[%c0_1, %c0_2] : memref<8x16xf32, #tpu.memory_space<vmem>>, vector<8x16xf32>
    %cst = arith.constant dense<0.000000e+00> : vector<8xf32>
    %2 = vector.multi_reduction <add>, %1, %cst [1] : vector<8x16xf32> to vector<8xf32>
    %3 = vector.shape_cast %2 : vector<8xf32> to vector<8x1xf32>
    %cst_3 = arith.constant 1.000000e+00 : f32
    %4 = vector.broadcast %cst_3 : f32 to vector<8x1xf32>
    %5 = arith.maximumf %3, %4 : vector<8x1xf32>
    %6 = tpu.reciprocal %5 {approx = true} : vector<8x1xf32> -> vector<8x1xf32>
    %7 = vector.broadcast %6 : vector<8x1xf32> to vector<8x16xf32>
    %8 = arith.mulf %1, %7 : vector<8x16xf32>
    %9 = tpu.iota {dimensions = array<i32: 2>} : vector<8x16x64xi32>
    %10 = vector.shape_cast %0 : vector<8x16xi32> to vector<8x16x1xi32>
    %11 = vector.broadcast %10 : vector<8x16x1xi32> to vector<8x16x64xi32>
    %12 = arith.cmpi eq, %11, %9 : vector<8x16x64xi32>
    %13 = vector.shape_cast %8 : vector<8x16xf32> to vector<8x16x1xf32>
    %cst_4 = arith.constant 0.000000e+00 : f32
    %14 = vector.shape_cast %13 : vector<8x16x1xf32> to vector<8x16x1xf32>
    %15 = vector.broadcast %14 : vector<8x16x1xf32> to vector<8x16x64xf32>
    %16 = vector.broadcast %cst_4 : f32 to vector<8x16x64xf32>
    %17 = arith.select %12, %15, %16 : vector<8x16x64xi1>, vector<8x16x64xf32>
    %cst_5 = arith.constant dense<0.000000e+00> : vector<8x64xf32>
    %18 = vector.multi_reduction <add>, %17, %cst_5 [1] : vector<8x16x64xf32> to vector<8x64xf32>
    %c0_6 = arith.constant 0 : index
    %c0_7 = arith.constant 0 : index
    %19 = vector.load %arg9[%c0_6, %c0_7] : memref<16x64xf32, #tpu.memory_space<vmem>>, vector<8x64xf32>
    tpu.vector_store %arg9[%c0_6, %c0_7], %18 {strides = array<i32>} : memref<16x64xf32, #tpu.memory_space<vmem>>, vector<8x64xf32>,
    %c0_8 = arith.constant 0 : index
    %c0_9 = arith.constant 0 : index
    %20 = vector.load %arg3[%c0_8, %c0_9] : memref<8x16xi32, #tpu.memory_space<vmem>>, vector<8x16xi32>
    %c0_10 = arith.constant 0 : index
    %c0_11 = arith.constant 0 : index
    %21 = vector.load %arg4[%c0_10, %c0_11] : memref<8x16xf32, #tpu.memory_space<vmem>>, vector<8x16xf32>
    %cst_12 = arith.constant dense<0.000000e+00> : vector<8xf32>
    %22 = vector.multi_reduction <add>, %21, %cst_12 [1] : vector<8x16xf32> to vector<8xf32>
    %23 = vector.shape_cast %22 : vector<8xf32> to vector<8x1xf32>
    %cst_13 = arith.constant 1.000000e+00 : f32
    %24 = vector.broadcast %cst_13 : f32 to vector<8x1xf32>
    %25 = arith.maximumf %23, %24 : vector<8x1xf32>
    %26 = tpu.reciprocal %25 {approx = true} : vector<8x1xf32> -> vector<8x1xf32>
    %27 = vector.broadcast %26 : vector<8x1xf32> to vector<8x16xf32>
    %28 = arith.mulf %21, %27 : vector<8x16xf32>
    %29 = tpu.iota {dimensions = array<i32: 2>} : vector<8x16x64xi32>
    %30 = vector.shape_cast %20 : vector<8x16xi32> to vector<8x16x1xi32>
    %31 = vector.broadcast %30 : vector<8x16x1xi32> to vector<8x16x64xi32>
    %32 = arith.cmpi eq, %31, %29 : vector<8x16x64xi32>
    %33 = vector.shape_cast %28 : vector<8x16xf32> to vector<8x16x1xf32>
    %cst_14 = arith.constant 0.000000e+00 : f32
    %34 = vector.shape_cast %33 : vector<8x16x1xf32> to vector<8x16x1xf32>
    %35 = vector.broadcast %34 : vector<8x16x1xf32> to vector<8x16x64xf32>
    %36 = vector.broadcast %cst_14 : f32 to vector<8x16x64xf32>
    %37 = arith.select %32, %35, %36 : vector<8x16x64xi1>, vector<8x16x64xf32>
    %cst_15 = arith.constant dense<0.000000e+00> : vector<8x64xf32>
    %38 = vector.multi_reduction <add>, %37, %cst_15 [1] : vector<8x16x64xf32> to vector<8x64xf32>
    %c8 = arith.constant 8 : index
    %c0_16 = arith.constant 0 : index
    %39 = vector.load %arg9[%c8, %c0_16] : memref<16x64xf32, #tpu.memory_space<vmem>>, vector<8x64xf32>
    tpu.vector_store %arg9[%c8, %c0_16], %38 {strides = array<i32>} : memref<16x64xf32, #tpu.memory_space<vmem>>, vector<8x64xf32>,
    %c0_17 = arith.constant 0 : index
    %c0_18 = arith.constant 0 : index
    %40 = vector.load %arg9[%c0_17, %c0_18] : memref<16x64xf32, #tpu.memory_space<vmem>>, vector<16x64xf32>
    %c0_19 = arith.constant 0 : index
    %c0_20 = arith.constant 0 : index
    %41 = vector.load %arg5[%c0_19, %c0_20] : memref<64x128xbf16, #tpu.memory_space<vmem>>, vector<64x128xbf16>
    %c0_21 = arith.constant 0 : index
    %c0_22 = arith.constant 0 : index
    %42 = vector.load %arg6[%c0_21, %c0_22] : memref<128x128xbf16, #tpu.memory_space<vmem>>, vector<128x128xbf16>
    %c0_23 = arith.constant 0 : index
    %c0_24 = arith.constant 0 : index
    %43 = vector.load %arg7[%c0_23, %c0_24] : memref<1x128xf32, #tpu.memory_space<vmem>>, vector<1x128xf32>
    %44 = arith.truncf %40 : vector<16x64xf32> to vector<16x64xbf16>
    %cst_25 = arith.constant dense<0.000000e+00> : vector<16x128xf32>
    %45 = tpu.matmul %44, %41, %cst_25 {dimension_numbers = #tpu.dot_dimension_numbers<[1], [0], [0], [1], [0, 0, 1, 1], [], []>} : vector<16x64xbf16>, vector<64x128xbf16>, vector<16x128xf32> -> vector<16x128xf32>
    %46 = arith.truncf %45 : vector<16x128xf32> to vector<16x128xbf16>
    %cst_26 = arith.constant dense<0.000000e+00> : vector<16x128xf32>
    %47 = tpu.matmul %46, %42, %cst_26 {dimension_numbers = #tpu.dot_dimension_numbers<[1], [0], [0], [1], [0, 0, 1, 1], [], []>} : vector<16x128xbf16>, vector<128x128xbf16>, vector<16x128xf32> -> vector<16x128xf32>
    %48 = vector.broadcast %43 : vector<1x128xf32> to vector<16x128xf32>
    %49 = arith.addf %47, %48 : vector<16x128xf32>
    %cst_27 = arith.constant 0.000000e+00 : f32
    %50 = vector.broadcast %cst_27 : f32 to vector<16x128xf32>
    %51 = arith.cmpf ogt, %49, %50 : vector<16x128xf32>
    %cst_28 = arith.constant 0.000000e+00 : f32
    %52 = vector.broadcast %cst_28 : f32 to vector<16x128xf32>
    %53 = arith.minimumf %49, %52 : vector<16x128xf32>
    %54 = math.exp %53 : vector<16x128xf32>
    %cst_29 = arith.constant 1.000000e+00 : f32
    %55 = vector.broadcast %cst_29 : f32 to vector<16x128xf32>
    %56 = arith.subf %54, %55 : vector<16x128xf32>
    %57 = arith.select %51, %49, %56 : vector<16x128xi1>, vector<16x128xf32>
    %c8_i32 = arith.constant 8 : i32
    %58 = arith.muli %arg0, %c8_i32 : i32
    %59 = tpu.assume_multiple %58, 8 : i32
    %60 = vector.extract_strided_slice %57 {offsets = [0, 0], sizes = [8, 128], strides = [1, 1]} : vector<16x128xf32> to vector<8x128xf32>
    %61 = arith.index_cast %59 : i32 to index
    %c0_30 = arith.constant 0 : index
    %62 = vector.load %arg10[%61, %c0_30] : memref<32x128xf32, #tpu.memory_space<vmem>>, vector<8x128xf32>
    tpu.vector_store %arg10[%61, %c0_30], %60 {strides = array<i32>} : memref<32x128xf32, #tpu.memory_space<vmem>>, vector<8x128xf32>,
    %63 = vector.extract_strided_slice %57 {offsets = [8, 0], sizes = [8, 128], strides = [1, 1]} : vector<16x128xf32> to vector<8x128xf32>
    %c16_i32 = arith.constant 16 : i32
    %64 = arith.addi %c16_i32, %59 : i32
    %65 = arith.index_cast %64 : i32 to index
    %c0_31 = arith.constant 0 : index
    %66 = vector.load %arg10[%65, %c0_31] : memref<32x128xf32, #tpu.memory_space<vmem>>, vector<8x128xf32>
    tpu.vector_store %arg10[%65, %c0_31], %63 {strides = array<i32>} : memref<32x128xf32, #tpu.memory_space<vmem>>, vector<8x128xf32>,
    %c1_i32 = arith.constant 1 : i32
    %67 = arith.cmpi eq, %arg0, %c1_i32 : i32
    %68 = arith.extui %67 : i1 to i32
    %c0_i32 = arith.constant 0 : i32
    %69 = arith.cmpi ne, %68, %c0_i32 : i32
    scf.if %69 {
      %c0_32 = arith.constant 0 : index
      %c0_33 = arith.constant 0 : index
      %70 = vector.load %arg10[%c0_32, %c0_33] : memref<32x128xf32, #tpu.memory_space<vmem>>, vector<16x128xf32>
      %c16 = arith.constant 16 : index
      %c0_34 = arith.constant 0 : index
      %71 = vector.load %arg10[%c16, %c0_34] : memref<32x128xf32, #tpu.memory_space<vmem>>, vector<16x128xf32>
      %cst_35 = arith.constant dense<0.000000e+00> : vector<16x16xf32>
      %72 = tpu.matmul %70, %71, %cst_35 {dimension_numbers = #tpu.dot_dimension_numbers<[1], [1], [0], [0], [0, 0, 1, 0], [], []>} : vector<16x128xf32>, vector<16x128xf32>, vector<16x16xf32> -> vector<16x16xf32>
      %cst_36 = arith.constant dense<0xFF800000> : vector<16xf32>
      %73 = vector.multi_reduction <maximumf>, %72, %cst_36 [1] : vector<16x16xf32> to vector<16xf32>
      %74 = vector.shape_cast %73 : vector<16xf32> to vector<16x1xf32>
      %75 = vector.broadcast %74 : vector<16x1xf32> to vector<16x16xf32>
      %76 = arith.subf %72, %75 : vector<16x16xf32>
      %77 = math.exp %76 : vector<16x16xf32>
      %cst_37 = arith.constant dense<0.000000e+00> : vector<16xf32>
      %78 = vector.multi_reduction <add>, %77, %cst_37 [1] : vector<16x16xf32> to vector<16xf32>
      %79 = vector.shape_cast %78 : vector<16xf32> to vector<16x1xf32>
      %80 = math.log %79 : vector<16x1xf32>
      %81 = arith.addf %74, %80 : vector<16x1xf32>
      %82 = tpu.iota {dimensions = array<i32: 0>} : vector<16x16xi32>
      %83 = tpu.iota {dimensions = array<i32: 1>} : vector<16x16xi32>
      %84 = arith.cmpi eq, %82, %83 : vector<16x16xi32>
      %cst_38 = arith.constant 0.000000e+00 : f32
      %85 = vector.broadcast %cst_38 : f32 to vector<16x16xf32>
      %86 = arith.select %84, %72, %85 : vector<16x16xi1>, vector<16x16xf32>
      %cst_39 = arith.constant dense<0.000000e+00> : vector<16xf32>
      %87 = vector.multi_reduction <add>, %86, %cst_39 [1] : vector<16x16xf32> to vector<16xf32>
      %88 = vector.shape_cast %87 : vector<16xf32> to vector<16x1xf32>
      %89 = arith.subf %81, %88 : vector<16x1xf32>
      %90 = vector.shape_cast %89 : vector<16x1xf32> to vector<1x16x1xf32>
      %cst_40 = arith.constant dense<0.000000e+00> : vector<1xf32>
      %91 = vector.multi_reduction <add>, %90, %cst_40 [1, 2] : vector<1x16x1xf32> to vector<1xf32>
      %92 = vector.shape_cast %91 : vector<1xf32> to vector<1x1x1xf32>
      %93 = vector.extract %92[0, 0, 0] : f32 from vector<1x1x1xf32>
      %cst_41 = arith.constant 1.600000e+01 : f32
      %94 = arith.divf %93, %cst_41 : f32
      %c0_42 = arith.constant 0 : index
      %c0_43 = arith.constant 0 : index
      %95 = memref.load %arg8[%c0_42, %c0_43] : memref<1x1xf32, #tpu.memory_space<smem>>
      memref.store %94, %arg8[%c0_42, %c0_43] : memref<1x1xf32, #tpu.memory_space<smem>>
    } else {
    }
    return
  }
  func.func @transform_0(%arg0: i32) -> (i32, i32) {
    %c0_i32 = arith.constant 0 : i32
    %c0_i32_0 = arith.constant 0 : i32
    return %arg0, %c0_i32 : i32, i32
  }
  func.func @transform_1(%arg0: i32) -> (i32, i32) {
    %c0_i32 = arith.constant 0 : i32
    %c0_i32_0 = arith.constant 0 : i32
    return %arg0, %c0_i32 : i32, i32
  }
  func.func @transform_2(%arg0: i32) -> (i32, i32) {
    %c0_i32 = arith.constant 0 : i32
    %c0_i32_0 = arith.constant 0 : i32
    return %arg0, %c0_i32 : i32, i32
  }
  func.func @transform_3(%arg0: i32) -> (i32, i32) {
    %c0_i32 = arith.constant 0 : i32
    %c0_i32_0 = arith.constant 0 : i32
    return %arg0, %c0_i32 : i32, i32
  }
  func.func @transform_4(%arg0: i32) -> (i32, i32) {
    %c0_i32 = arith.constant 0 : i32
    %c0_i32_0 = arith.constant 0 : i32
    %c0_i32_1 = arith.constant 0 : i32
    return %c0_i32, %c0_i32_0 : i32, i32
  }
  func.func @transform_5(%arg0: i32) -> (i32, i32) {
    %c0_i32 = arith.constant 0 : i32
    %c0_i32_0 = arith.constant 0 : i32
    %c0_i32_1 = arith.constant 0 : i32
    return %c0_i32, %c0_i32_0 : i32, i32
  }
  func.func @transform_6(%arg0: i32) -> (i32, i32) {
    %c0_i32 = arith.constant 0 : i32
    %c0_i32_0 = arith.constant 0 : i32
    %c0_i32_1 = arith.constant 0 : i32
    return %c0_i32, %c0_i32_0 : i32, i32
  }
  func.func @transform_7(%arg0: i32) -> (i32, i32) {
    %c0_i32 = arith.constant 0 : i32
    %c0_i32_0 = arith.constant 0 : i32
    %c0_i32_1 = arith.constant 0 : i32
    return %c0_i32, %c0_i32_0 : i32, i32
  }
}

</mosaic_0001>

<llo_original>
// kernel: tpu_custom_call.1
$region0: #{tpu_custom_call.1}
  #allocation0 [shape = 'u32[]', space=smem, size = 0x4, offset = 0x4, fixed_abs, tag = 'smem constant byte address 0x4 - core index']
  #allocation1 [shape = 'u32[72,128]{1,0:T(1,128)}', space=vmem, size = 0x9000, scoped, tag = 'internal scratch']
  #allocation2 [shape = 'f32[16,64]{1,0:T(8,128)}', space=vmem, size = 0x2000, scoped, tag = 'scratch operand']
  #allocation3 [shape = 'f32[32,128]{1,0:T(8,128)}', space=vmem, size = 0x4000, scoped, tag = 'scratch operand']
  %s0 = inlined_call_operand.hbm [shape: s32[16,16], index: 0, kind: input, shape index: {}]
  %s1 = inlined_call_operand.hbm [shape: f32[16,16], index: 1, kind: input, shape index: {}]
  %s2 = inlined_call_operand.hbm [shape: s32[16,16], index: 2, kind: input, shape index: {}]
  %s3 = inlined_call_operand.hbm [shape: f32[16,16], index: 3, kind: input, shape index: {}]
  %s4 = inlined_call_operand.hbm [shape: bf16[64,128], index: 4, kind: input, shape index: {}]
  %s5 = inlined_call_operand.hbm [shape: bf16[128,128], index: 5, kind: input, shape index: {}]
  %s6 = inlined_call_operand.vmem [shape: f32[1,128], index: 6, kind: input, shape index: {}]
  %s7 = inlined_call_operand.hbm [shape: f32[1,1], index: 7, kind: output, shape index: {}]
  %s8 = sld [smem:[#allocation0]]
  $region89: #{tpu_custom_call.1} parent=0
    _
  %s10 = ssub.s32 1, %s8
  %s11 = scalar_select 0, %s10, %s8
  $region1: #{tpu_custom_call.1} parent=0
    #allocation4 [shape = 'u8[8192]{0}', space=vmem, size = 0x2000, scoped, tag = 'input window, operand 0']
    #allocation5 [shape = 's32[2]{0}', space=sflag, size = 0x8, scoped, tag = 'scoped memory for tpu_custom_call.1']
    #allocation6 [shape = 's32[2]{0}', space=sflag, size = 0x8, scoped, tag = 'scoped memory for tpu_custom_call.1']
    #allocation7 [shape = 'u8[8192]{0}', space=vmem, size = 0x2000, scoped, tag = 'input window, operand 1']
    #allocation8 [shape = 's32[2]{0}', space=sflag, size = 0x8, scoped, tag = 'scoped memory for tpu_custom_call.1']
    #allocation9 [shape = 'u8[8192]{0}', space=vmem, size = 0x2000, scoped, tag = 'input window, operand 2']
    #allocation10 [shape = 'u8[8192]{0}', space=vmem, size = 0x2000, scoped, tag = 'input window, operand 3']
    #allocation11 [shape = 's32[2]{0}', space=sflag, size = 0x8, scoped, tag = 'scoped memory for tpu_custom_call.1']
    #allocation12 [shape = 'u8[16384]{0}', space=vmem, size = 0x4000, scoped, tag = 'input window, operand 4, single buffered']
    #allocation13 [shape = 'u8[32768]{0}', space=vmem, size = 0x8000, scoped, tag = 'input window, operand 5, single buffered']
    #allocation14 [shape = 's32[1]{0}', space=sflag, size = 0x4, scoped, tag = 'scoped memory for tpu_custom_call.1']
    #allocation15 [shape = 'u8[512]{0}', space=smem, size = 0x200, scoped, tag = 'output window, operand 0, single buffered']
    %12 = vsyncpa [#allocation5], 0
    %s13 = scalar_lea.sflag [#allocation5], 1
    %14 = vsyncpa %s13, 0
    %15 = vsyncpa [#allocation8], 0
    %s16 = scalar_lea.sflag [#allocation8], 1
    %17 = vsyncpa %s16, 0
    %18 = vsyncpa [#allocation11], 0
    %s19 = scalar_lea.sflag [#allocation11], 1
    %20 = vsyncpa %s19, 0
    %21 = vsyncpa [#allocation14], 0
    %22 = vsyncpa [#allocation6], 0
    loop: start=0, step=1, limit=4
    $region2: #{tpu_custom_call.1} parent=1 // loop_pre_header
      _
    $region3: #{tpu_custom_call.1} parent=1 // loop_header
      %s24 = sphi 0, %s28
      %p25 = scmp.ge.s32.totalorder %s24, 4
      %s34 = sphi 0, %s36
      %s37 = sphi 0, %s34
      %s38 = sphi 0, %s37
      %s54 = sphi 0, %s38
      %s60 = sphi 0, %s62
      %s63 = sphi 0, %s60
      %s64 = sphi 0, %s63
      %s80 = sphi 0, %s64
      %s86 = sphi 0, %s88
      %s89 = sphi 0, %s86
      %s90 = sphi 0, %s89
      %s106 = sphi 0, %s90
      %s112 = sphi 0, %s114
      %s115 = sphi 0, %s112
      %s116 = sphi 0, %s115
      %s132 = sphi 0, %s116
      %s136 = sphi 0, %s136
      %s138 = sphi 0, %s136
      %s139 = sphi 0, %s138
      %s153 = sphi 0, %s139
      %s157 = sphi 0, %s157
      %s159 = sphi 0, %s157
      %s160 = sphi 0, %s159
      %s174 = sphi 0, %s160
      %s178 = sphi 0, %s178
      %s180 = sphi 0, %s178
      %s181 = sphi 0, %s180
      %s195 = sphi 0, %s181
      %s199 = sphi 0, %s199
      %s201 = sphi 0, %s199
      %s202 = sphi 0, %s201
      %s216 = sphi 0, %s202
    $region4: #{tpu_custom_call.1} parent=1 // loop_header_branch
      %27 = sbr.rel (%p25) target = $region8
    $region5: #{tpu_custom_call.1} parent=1 // loop_body
      %s29 = ssub.s32 %s24, 1
      %s30 = ssub.s32 %s24, 2
      %s31 = sadd.s32 %s24, 1
      %s32 = ssub.s32 %s24, %s31
      %p33 = scmp.eq.s32.totalorder %s32, 0
      %s35 = sadd.s32 %s34, 1
      %s36 = scalar_select %p33, %s34, %s35
      %p39 = pneg %p33
      %p40 = scmp.eq.s32.totalorder %s24, 1
      %p41 = por %p39, %p40
      %p42 = scmp.ne.s32.totalorder %s34, %s37
      %p43 = scmp.eq.s32.totalorder %s24, 0
      %p44 = por %p42, %p43
      %p45 = scmp.ne.s32.totalorder %s34, %s37
      %p46 = scmp.eq.s32.totalorder %s29, 1
      %p47 = por %p45, %p46
      %p48 = scmp.ne.s32.totalorder %s37, %s38
      %p49 = scmp.eq.s32.totalorder %s29, 0
      %p50 = por %p48, %p49
      %p51 = scmp.ne.s32.totalorder %s37, %s38
      %p52 = scmp.eq.s32.totalorder %s30, 1
      %p53 = por %p51, %p52
      %p55 = scmp.ne.s32.totalorder %s38, %s54
      %p56 = scmp.eq.s32.totalorder %s30, 0
      %p57 = por %p55, %p56
      %s58 = ssub.s32 %s24, %s31
      %p59 = scmp.eq.s32.totalorder %s58, 0
      %s61 = sadd.s32 %s60, 1
      %s62 = scalar_select %p59, %s60, %s61
      %p65 = pneg %p59
      %p66 = scmp.eq.s32.totalorder %s24, 1
      %p67 = por %p65, %p66
      %p68 = scmp.ne.s32.totalorder %s60, %s63
      %p69 = scmp.eq.s32.totalorder %s24, 0
      %p70 = por %p68, %p69
      %p71 = scmp.ne.s32.totalorder %s60, %s63
      %p72 = scmp.eq.s32.totalorder %s29, 1
      %p73 = por %p71, %p72
      %p74 = scmp.ne.s32.totalorder %s63, %s64
      %p75 = scmp.eq.s32.totalorder %s29, 0
      %p76 = por %p74, %p75
      %p77 = scmp.ne.s32.totalorder %s63, %s64
      %p78 = scmp.eq.s32.totalorder %s30, 1
      %p79 = por %p77, %p78
      %p81 = scmp.ne.s32.totalorder %s64, %s80
      %p82 = scmp.eq.s32.totalorder %s30, 0
      %p83 = por %p81, %p82
      %s84 = ssub.s32 %s24, %s31
      %p85 = scmp.eq.s32.totalorder %s84, 0
      %s87 = sadd.s32 %s86, 1
      %s88 = scalar_select %p85, %s86, %s87
      %p91 = pneg %p85
      %p92 = scmp.eq.s32.totalorder %s24, 1
      %p93 = por %p91, %p92
      %p94 = scmp.ne.s32.totalorder %s86, %s89
      %p95 = scmp.eq.s32.totalorder %s24, 0
      %p96 = por %p94, %p95
      %p97 = scmp.ne.s32.totalorder %s86, %s89
      %p98 = scmp.eq.s32.totalorder %s29, 1
      %p99 = por %p97, %p98
      %p100 = scmp.ne.s32.totalorder %s89, %s90
      %p101 = scmp.eq.s32.totalorder %s29, 0
      %p102 = por %p100, %p101
      %p103 = scmp.ne.s32.totalorder %s89, %s90
      %p104 = scmp.eq.s32.totalorder %s30, 1
      %p105 = por %p103, %p104
      %p107 = scmp.ne.s32.totalorder %s90, %s106
      %p108 = scmp.eq.s32.totalorder %s30, 0
      %p109 = por %p107, %p108
      %s110 = ssub.s32 %s24, %s31
      %p111 = scmp.eq.s32.totalorder %s110, 0
      %s113 = sadd.s32 %s112, 1
      %s114 = scalar_select %p111, %s112, %s113
      %p117 = pneg %p111
      %p118 = scmp.eq.s32.totalorder %s24, 1
      %p119 = por %p117, %p118
      %p120 = scmp.ne.s32.totalorder %s112, %s115
      %p121 = scmp.eq.s32.totalorder %s24, 0
      %p122 = por %p120, %p121
      %p123 = scmp.ne.s32.totalorder %s112, %s115
      %p124 = scmp.eq.s32.totalorder %s29, 1
      %p125 = por %p123, %p124
      %p126 = scmp.ne.s32.totalorder %s115, %s116
      %p127 = scmp.eq.s32.totalorder %s29, 0
      %p128 = por %p126, %p127
      %p129 = scmp.ne.s32.totalorder %s115, %s116
      %p130 = scmp.eq.s32.totalorder %s30, 1
      %p131 = por %p129, %p130
      %p133 = scmp.ne.s32.totalorder %s116, %s132
      %p134 = scmp.eq.s32.totalorder %s30, 0
      %p135 = por %p133, %p134
      %s137 = sadd.s32 %s136, 1
      %p140 = scmp.eq.s32.totalorder %s24, 1
      %p141 = scmp.ne.s32.totalorder %s136, %s138
      %p142 = scmp.eq.s32.totalorder %s24, 0
      %p143 = por %p141, %p142
      %p144 = scmp.ne.s32.totalorder %s136, %s138
      %p145 = scmp.eq.s32.totalorder %s29, 1
      %p146 = por %p144, %p145
      %p147 = scmp.ne.s32.totalorder %s138, %s139
      %p148 = scmp.eq.s32.totalorder %s29, 0
      %p149 = por %p147, %p148
      %p150 = scmp.ne.s32.totalorder %s138, %s139
      %p151 = scmp.eq.s32.totalorder %s30, 1
      %p152 = por %p150, %p151
      %p154 = scmp.ne.s32.totalorder %s139, %s153
      %p155 = scmp.eq.s32.totalorder %s30, 0
      %p156 = por %p154, %p155
      %s158 = sadd.s32 %s157, 1
      %p161 = scmp.eq.s32.totalorder %s24, 1
      %p162 = scmp.ne.s32.totalorder %s157, %s159
      %p163 = scmp.eq.s32.totalorder %s24, 0
      %p164 = por %p162, %p163
      %p165 = scmp.ne.s32.totalorder %s157, %s159
      %p166 = scmp.eq.s32.totalorder %s29, 1
      %p167 = por %p165, %p166
      %p168 = scmp.ne.s32.totalorder %s159, %s160
      %p169 = scmp.eq.s32.totalorder %s29, 0
      %p170 = por %p168, %p169
      %p171 = scmp.ne.s32.totalorder %s159, %s160
      %p172 = scmp.eq.s32.totalorder %s30, 1
      %p173 = por %p171, %p172
      %p175 = scmp.ne.s32.totalorder %s160, %s174
      %p176 = scmp.eq.s32.totalorder %s30, 0
      %p177 = por %p175, %p176
      %s179 = sadd.s32 %s178, 1
      %p182 = scmp.eq.s32.totalorder %s24, 1
      %p183 = scmp.ne.s32.totalorder %s178, %s180
      %p184 = scmp.eq.s32.totalorder %s24, 0
      %p185 = por %p183, %p184
      %p186 = scmp.ne.s32.totalorder %s178, %s180
      %p187 = scmp.eq.s32.totalorder %s29, 1
      %p188 = por %p186, %p187
      %p189 = scmp.ne.s32.totalorder %s180, %s181
      %p190 = scmp.eq.s32.totalorder %s29, 0
      %p191 = por %p189, %p190
      %p192 = scmp.ne.s32.totalorder %s180, %s181
      %p193 = scmp.eq.s32.totalorder %s30, 1
      %p194 = por %p192, %p193
      %p196 = scmp.ne.s32.totalorder %s181, %s195
      %p197 = scmp.eq.s32.totalorder %s30, 0
      %p198 = por %p196, %p197
      %s200 = sadd.s32 %s199, 1
      %p203 = scmp.eq.s32.totalorder %s24, 1
      %p204 = scmp.ne.s32.totalorder %s199, %s201
      %p205 = scmp.eq.s32.totalorder %s24, 0
      %p206 = por %p204, %p205
      %p207 = scmp.ne.s32.totalorder %s199, %s201
      %p208 = scmp.eq.s32.totalorder %s29, 1
      %p209 = por %p207, %p208
      %p210 = scmp.ne.s32.totalorder %s201, %s202
      %p211 = scmp.eq.s32.totalorder %s29, 0
      %p212 = por %p210, %p211
      %p213 = scmp.ne.s32.totalorder %s201, %s202
      %p214 = scmp.eq.s32.totalorder %s30, 1
      %p215 = por %p213, %p214
      %p217 = scmp.ne.s32.totalorder %s202, %s216
      %p218 = scmp.eq.s32.totalorder %s30, 0
      %p219 = por %p217, %p218
      %p220 = scmp.le.s32.totalorder 1, %s24
      %p221 = scmp.lt.s32.totalorder %s24, 3
      %p222 = pnand %p220, %p221
      %p223 = pneg %p222
      // Predicated region
      $region9: #{tpu_custom_call.1} parent=5 // pred_check
        _
      $region10: #{tpu_custom_call.1} parent=5 // pred_check_branch
        %225 = sbr.rel (%p222) target = $region12
      $region11: #{tpu_custom_call.1} parent=5 // pred_region
        %s226 = ssub.s32 %s24, 1
        // Predicated region
        $region13: #{tpu_custom_call.1} parent=11 // pred_check
          %p227 = pneg %p149
        $region14: #{tpu_custom_call.1} parent=11 // pred_check_branch
          %229 = sbr.rel (%p227) target = $region16
        $region15: #{tpu_custom_call.1} parent=11 // pred_region
          %231 = vsyncadd [#allocation11], 0
          %s232 = sshll.u32 %s4, 4
          %s233 = int_to_ptr.hbm [resolvable:$true] %s232
          %s234 = sshll.u32 [#allocation12], 4
          %s235 = int_to_ptr.vmem [resolvable:$true] %s234
          %240 = dma.hbm_to_vmem [thread:$0]  %s233, 512, %s235, [#allocation11], 64, 64, 4
        $region16: #{tpu_custom_call.1} parent=11 // pred_fallthru
          _
        // Predicated region
        $region17: #{tpu_custom_call.1} parent=11 // pred_check
          %p241 = pneg %p170
        $region18: #{tpu_custom_call.1} parent=11 // pred_check_branch
          %243 = sbr.rel (%p241) target = $region20
        $region19: #{tpu_custom_call.1} parent=11 // pred_region
          %245 = vsyncadd [#allocation14], 0
          %s246 = sshll.u32 %s5, 4
          %s247 = int_to_ptr.hbm [resolvable:$true] %s246
          %s248 = sshll.u32 [#allocation13], 4
          %s249 = int_to_ptr.vmem [resolvable:$true] %s248
          %254 = dma.hbm_to_vmem [thread:$0]  %s247, 1024, %s249, [#allocation14], 64, 64, 4
        $region20: #{tpu_custom_call.1} parent=11 // pred_fallthru
          _
        // Predicated region
        $region21: #{tpu_custom_call.1} parent=11 // pred_check
          %p255 = pneg %p191
        $region22: #{tpu_custom_call.1} parent=11 // pred_check_branch
          %257 = sbr.rel (%p255) target = $region24
        $region23: #{tpu_custom_call.1} parent=11 // pred_region
          _
        $region24: #{tpu_custom_call.1} parent=11 // pred_fallthru
          _
      $region12: #{tpu_custom_call.1} parent=5 // pred_fallthru
        _
      %p258 = scmp.lt.s32.totalorder %s24, 2
      // Predicated region
      $region25: #{tpu_custom_call.1} parent=5 // pred_check
        %p259 = pneg %p258
      $region26: #{tpu_custom_call.1} parent=5 // pred_check_branch
        %261 = sbr.rel (%p259) target = $region28
      $region27: #{tpu_custom_call.1} parent=5 // pred_region
        // Predicated region
        $region29: #{tpu_custom_call.1} parent=27 // pred_check
          %p262 = pneg %p44
        $region30: #{tpu_custom_call.1} parent=27 // pred_check_branch
          %264 = sbr.rel (%p262) target = $region32
        $region31: #{tpu_custom_call.1} parent=27 // pred_region
          %s265 = sand.u32 %s34, 1
          %s266 = scalar_lea.sflag [#allocation5], %s265
          %s267 = sand.u32 %s34, 1
          %s268 = smul.addr %s267, 8
          %s269 = scalar_lea.vmem [#allocation4], %s268
          %271 = vsyncadd %s266, 0
          %s272 = smul.addr %s24, 8
          %s273 = scalar_lea.hbm %s0, %s272
          %s275 = sshll.u32 %s273, 4
          %s276 = int_to_ptr.hbm [resolvable:$true] %s275
          %s277 = sshll.u32 %s269, 4
          %s278 = int_to_ptr.vmem [resolvable:$true] %s277
          %280 = dma.hbm_to_vmem [thread:$0]  %s276, 128, %s278, %s266
        $region32: #{tpu_custom_call.1} parent=27 // pred_fallthru
          _
        // Predicated region
        $region33: #{tpu_custom_call.1} parent=27 // pred_check
          %p281 = pneg %p70
        $region34: #{tpu_custom_call.1} parent=27 // pred_check_branch
          %283 = sbr.rel (%p281) target = $region36
        $region35: #{tpu_custom_call.1} parent=27 // pred_region
          %s284 = sand.u32 %s24, 1
          %s285 = scalar_lea.sflag [#allocation8], %s284
          %s286 = sand.u32 %s60, 1
          %s287 = smul.addr %s286, 8
          %s288 = scalar_lea.vmem [#allocation7], %s287
          %290 = vsyncadd %s285, 0
          %s291 = smul.addr %s24, 8
          %s292 = scalar_lea.hbm %s1, %s291
          %s294 = sshll.u32 %s292, 4
          %s295 = int_to_ptr.hbm [resolvable:$true] %s294
          %s296 = sshll.u32 %s288, 4
          %s297 = int_to_ptr.vmem [resolvable:$true] %s296
          %299 = dma.hbm_to_vmem [thread:$0]  %s295, 128, %s297, %s285
        $region36: #{tpu_custom_call.1} parent=27 // pred_fallthru
          _
        // Predicated region
        $region37: #{tpu_custom_call.1} parent=27 // pred_check
          %p300 = pneg %p96
        $region38: #{tpu_custom_call.1} parent=27 // pred_check_branch
          %302 = sbr.rel (%p300) target = $region40
        $region39: #{tpu_custom_call.1} parent=27 // pred_region
          %s303 = sand.u32 %s24, 1
          %s304 = scalar_lea.sflag [#allocation8], %s303
          %s305 = sand.u32 %s86, 1
          %s306 = smul.addr %s305, 8
          %s307 = scalar_lea.vmem [#allocation9], %s306
          %309 = vsyncadd %s304, 0
          %s310 = smul.addr %s24, 8
          %s311 = scalar_lea.hbm %s2, %s310
          %s313 = sshll.u32 %s311, 4
          %s314 = int_to_ptr.hbm [resolvable:$true] %s313
          %s315 = sshll.u32 %s307, 4
          %s316 = int_to_ptr.vmem [resolvable:$true] %s315
          %318 = dma.hbm_to_vmem [thread:$0]  %s314, 128, %s316, %s304
        $region40: #{tpu_custom_call.1} parent=27 // pred_fallthru
          _
        // Predicated region
        $region41: #{tpu_custom_call.1} parent=27 // pred_check
          %p319 = pneg %p122
        $region42: #{tpu_custom_call.1} parent=27 // pred_check_branch
          %321 = sbr.rel (%p319) target = $region44
        $region43: #{tpu_custom_call.1} parent=27 // pred_region
          %s322 = sand.u32 %s24, 1
          %s323 = scalar_lea.sflag [#allocation11], %s322
          %s324 = sand.u32 %s112, 1
          %s325 = smul.addr %s324, 8
          %s326 = scalar_lea.vmem [#allocation10], %s325
          %328 = vsyncadd %s323, 0
          %s329 = smul.addr %s24, 8
          %s330 = scalar_lea.hbm %s3, %s329
          %s332 = sshll.u32 %s330, 4
          %s333 = int_to_ptr.hbm [resolvable:$true] %s332
          %s334 = sshll.u32 %s326, 4
          %s335 = int_to_ptr.vmem [resolvable:$true] %s334
          %337 = dma.hbm_to_vmem [thread:$0]  %s333, 128, %s335, %s323
        $region44: #{tpu_custom_call.1} parent=27 // pred_fallthru
          _
      $region28: #{tpu_custom_call.1} parent=5 // pred_fallthru
        _
      %p338 = scmp.le.s32.totalorder 1, %s24
      %p339 = scmp.lt.s32.totalorder %s24, 3
      %p340 = pnand %p338, %p339
      %p341 = pneg %p340
      // Predicated region
      $region45: #{tpu_custom_call.1} parent=5 // pred_check
        _
      $region46: #{tpu_custom_call.1} parent=5 // pred_check_branch
        %343 = sbr.rel (%p340) target = $region48
      $region47: #{tpu_custom_call.1} parent=5 // pred_region
        %s344 = ssub.s32 %s24, 1
        %s345 = sand.u32 %s37, 1
        %s346 = scalar_lea.sflag [#allocation5], %s345
        %s347 = sand.u32 %s37, 1
        %s348 = smul.addr %s347, 8
        %s349 = scalar_lea.vmem [#allocation4], %s348
        // Predicated region
        $region49: #{tpu_custom_call.1} parent=47 // pred_check
          %p350 = pneg %p50
        $region50: #{tpu_custom_call.1} parent=47 // pred_check_branch
          %352 = sbr.rel (%p350) target = $region52
        $region51: #{tpu_custom_call.1} parent=47 // pred_region
          %354 = dma.done %s346, 128
        $region52: #{tpu_custom_call.1} parent=47 // pred_fallthru
          _
        %s355 = sand.u32 %s29, 1
        %s356 = scalar_lea.sflag [#allocation8], %s355
        %s357 = sand.u32 %s63, 1
        %s358 = smul.addr %s357, 8
        %s359 = scalar_lea.vmem [#allocation7], %s358
        // Predicated region
        $region53: #{tpu_custom_call.1} parent=47 // pred_check
          %p360 = pneg %p76
        $region54: #{tpu_custom_call.1} parent=47 // pred_check_branch
          %362 = sbr.rel (%p360) target = $region56
        $region55: #{tpu_custom_call.1} parent=47 // pred_region
          %364 = dma.done %s356, 128
        $region56: #{tpu_custom_call.1} parent=47 // pred_fallthru
          _
        %s365 = sand.u32 %s29, 1
        %s366 = scalar_lea.sflag [#allocation8], %s365
        %s367 = sand.u32 %s89, 1
        %s368 = smul.addr %s367, 8
        %s369 = scalar_lea.vmem [#allocation9], %s368
        // Predicated region
        $region57: #{tpu_custom_call.1} parent=47 // pred_check
          %p370 = pneg %p102
        $region58: #{tpu_custom_call.1} parent=47 // pred_check_branch
          %372 = sbr.rel (%p370) target = $region60
        $region59: #{tpu_custom_call.1} parent=47 // pred_region
          %374 = dma.done %s366, 128
        $region60: #{tpu_custom_call.1} parent=47 // pred_fallthru
          _
        %s375 = sand.u32 %s29, 1
        %s376 = scalar_lea.sflag [#allocation11], %s375
        %s377 = sand.u32 %s115, 1
        %s378 = smul.addr %s377, 8
        %s379 = scalar_lea.vmem [#allocation10], %s378
        // Predicated region
        $region61: #{tpu_custom_call.1} parent=47 // pred_check
          %p380 = pneg %p128
        $region62: #{tpu_custom_call.1} parent=47 // pred_check_branch
          %382 = sbr.rel (%p380) target = $region64
        $region63: #{tpu_custom_call.1} parent=47 // pred_region
          %384 = dma.done %s376, 128
        $region64: #{tpu_custom_call.1} parent=47 // pred_fallthru
          _
        // Predicated region
        $region65: #{tpu_custom_call.1} parent=47 // pred_check
          %p385 = pneg %p149
        $region66: #{tpu_custom_call.1} parent=47 // pred_check_branch
          %387 = sbr.rel (%p385) target = $region68
        $region67: #{tpu_custom_call.1} parent=47 // pred_region
          %389 = dma.done [#allocation11], 512
        $region68: #{tpu_custom_call.1} parent=47 // pred_fallthru
          _
        // Predicated region
        $region69: #{tpu_custom_call.1} parent=47 // pred_check
          %p390 = pneg %p170
        $region70: #{tpu_custom_call.1} parent=47 // pred_check_branch
          %392 = sbr.rel (%p390) target = $region72
        $region71: #{tpu_custom_call.1} parent=47 // pred_region
          %394 = dma.done [#allocation14], 1024
        $region72: #{tpu_custom_call.1} parent=47 // pred_fallthru
          _
        %s395 = sand.u32 %s37, 1
        %s396 = scalar_lea.sflag [#allocation5], %s395
        %s397 = sand.u32 %s37, 1
        %s398 = smul.addr %s397, 8
        %s399 = scalar_lea.vmem [#allocation4], %s398
        %p400 = pneg %p50
        %p401 = pneg %p47
        %s402 = sand.u32 %s29, 1
        %s403 = scalar_lea.sflag [#allocation8], %s402
        %s404 = sand.u32 %s63, 1
        %s405 = smul.addr %s404, 8
        %s406 = scalar_lea.vmem [#allocation7], %s405
        %p407 = pneg %p76
        %p408 = pneg %p73
        %s409 = sand.u32 %s29, 1
        %s410 = scalar_lea.sflag [#allocation8], %s409
        %s411 = sand.u32 %s89, 1
        %s412 = smul.addr %s411, 8
        %s413 = scalar_lea.vmem [#allocation9], %s412
        %p414 = pneg %p102
        %p415 = pneg %p99
        %s416 = sand.u32 %s29, 1
        %s417 = scalar_lea.sflag [#allocation11], %s416
        %s418 = sand.u32 %s115, 1
        %s419 = smul.addr %s418, 8
        %s420 = scalar_lea.vmem [#allocation10], %s419
        %p421 = pneg %p128
        %p422 = pneg %p125
        %p423 = pneg %p149
        %p424 = pneg %p146
        %p425 = pneg %p170
        %p426 = pneg %p167
        %p427 = pneg %p191
        %p428 = pneg %p188
        %p429 = pneg %p212
        %p430 = pneg %p209
        %v432 = vld [vmem:[%s349] sm:$0xff]
        %v433 = vld [vmem:[%s359] sm:$0xff]
        %vm434 = vcmask 130048
        %v435 = vsel %vm434, %v433, 0.0
        %436 = vadd.xlane.f32.xlu0 %v435
        %v437 = vpop.xlane.xlu0 %436
        %v438 = vmax.f32 %v437, 1.0
        %v439 = vrcp.pop %v438
        %v440 = vmul.f32 %v433, %v439
        %v441 = vlaneseq
        %v442 = vand.u32 %v441, 127
        %v443 = vperm.slane %v432, 0
        %v444 = vlaneseq
        %v445 = vshrl.u32 %v444, 7
        %447 = vset.pattern.permute.xlu0 %v445
        %448 = vperm.xlu0 %447, %v443
        %v449 = vpop.permute.xlu0 %448
        %v450 = vlaneseq
        %v451 = vshrl.u32 %v450, 7
        %v452 = vadd.s32 %v451, 8
        %453 = vset.pattern.permute.xlu0 %v452
        %454 = vperm.xlu0 %453, %v443
        %v455 = vpop.permute.xlu0 %454
        %v456 = vperm.slane %v432, 1
        %v457 = vlaneseq
        %v458 = vshrl.u32 %v457, 7
        %460 = vset.pattern.permute.xlu0 %v458
        %461 = vperm.xlu0 %460, %v456
        %v462 = vpop.permute.xlu0 %461
        %v463 = vlaneseq
        %v464 = vshrl.u32 %v463, 7
        %v465 = vadd.s32 %v464, 8
        %466 = vset.pattern.permute.xlu0 %v465
        %467 = vperm.xlu0 %466, %v456
        %v468 = vpop.permute.xlu0 %467
        %v469 = vperm.slane %v432, 2
        %v470 = vlaneseq
        %v471 = vshrl.u32 %v470, 7
        %473 = vset.pattern.permute.xlu0 %v471
        %474 = vperm.xlu0 %473, %v469
        %v475 = vpop.permute.xlu0 %474
        %v476 = vlaneseq
        %v477 = vshrl.u32 %v476, 7
        %v478 = vadd.s32 %v477, 8
        %479 = vset.pattern.permute.xlu0 %v478
        %480 = vperm.xlu0 %479, %v469
        %v481 = vpop.permute.xlu0 %480
        %v482 = vperm.slane %v432, 3
        %v483 = vlaneseq
        %v484 = vshrl.u32 %v483, 7
        %486 = vset.pattern.permute.xlu0 %v484
        %487 = vperm.xlu0 %486, %v482
        %v488 = vpop.permute.xlu0 %487
        %v489 = vlaneseq
        %v490 = vshrl.u32 %v489, 7
        %v491 = vadd.s32 %v490, 8
        %492 = vset.pattern.permute.xlu0 %v491
        %493 = vperm.xlu0 %492, %v482
        %v494 = vpop.permute.xlu0 %493
        %v495 = vperm.slane %v432, 4
        %v496 = vlaneseq
        %v497 = vshrl.u32 %v496, 7
        %499 = vset.pattern.permute.xlu0 %v497
        %500 = vperm.xlu0 %499, %v495
        %v501 = vpop.permute.xlu0 %500
        %v502 = vlaneseq
        %v503 = vshrl.u32 %v502, 7
        %v504 = vadd.s32 %v503, 8
        %505 = vset.pattern.permute.xlu0 %v504
        %506 = vperm.xlu0 %505, %v495
        %v507 = vpop.permute.xlu0 %506
        %v508 = vperm.slane %v432, 5
        %v509 = vlaneseq
        %v510 = vshrl.u32 %v509, 7
        %512 = vset.pattern.permute.xlu0 %v510
        %513 = vperm.xlu0 %512, %v508
        %v514 = vpop.permute.xlu0 %513
        %v515 = vlaneseq
        %v516 = vshrl.u32 %v515, 7
        %v517 = vadd.s32 %v516, 8
        %518 = vset.pattern.permute.xlu0 %v517
        %519 = vperm.xlu0 %518, %v508
        %v520 = vpop.permute.xlu0 %519
        %v521 = vperm.slane %v432, 6
        %v522 = vlaneseq
        %v523 = vshrl.u32 %v522, 7
        %525 = vset.pattern.permute.xlu0 %v523
        %526 = vperm.xlu0 %525, %v521
        %v527 = vpop.permute.xlu0 %526
        %v528 = vlaneseq
        %v529 = vshrl.u32 %v528, 7
        %v530 = vadd.s32 %v529, 8
        %531 = vset.pattern.permute.xlu0 %v530
        %532 = vperm.xlu0 %531, %v521
        %v533 = vpop.permute.xlu0 %532
        %v534 = vperm.slane %v432, 7
        %v535 = vlaneseq
        %v536 = vshrl.u32 %v535, 7
        %538 = vset.pattern.permute.xlu0 %v536
        %539 = vperm.xlu0 %538, %v534
        %v540 = vpop.permute.xlu0 %539
        %v541 = vlaneseq
        %v542 = vshrl.u32 %v541, 7
        %v543 = vadd.s32 %v542, 8
        %544 = vset.pattern.permute.xlu0 %v543
        %545 = vperm.xlu0 %544, %v534
        %v546 = vpop.permute.xlu0 %545
        %vm547 = vcmp.eq.s32.totalorder %v449, %v442
        %vm548 = vcmp.eq.s32.totalorder %v455, %v442
        %vm549 = vcmp.eq.s32.totalorder %v462, %v442
        %vm550 = vcmp.eq.s32.totalorder %v468, %v442
        %vm551 = vcmp.eq.s32.totalorder %v475, %v442
        %vm552 = vcmp.eq.s32.totalorder %v481, %v442
        %vm553 = vcmp.eq.s32.totalorder %v488, %v442
        %vm554 = vcmp.eq.s32.totalorder %v494, %v442
        %vm555 = vcmp.eq.s32.totalorder %v501, %v442
        %vm556 = vcmp.eq.s32.totalorder %v507, %v442
        %vm557 = vcmp.eq.s32.totalorder %v514, %v442
        %vm558 = vcmp.eq.s32.totalorder %v520, %v442
        %vm559 = vcmp.eq.s32.totalorder %v527, %v442
        %vm560 = vcmp.eq.s32.totalorder %v533, %v442
        %vm561 = vcmp.eq.s32.totalorder %v540, %v442
        %vm562 = vcmp.eq.s32.totalorder %v546, %v442
        %v563 = vperm.slane %v440, 0
        %v564 = vlaneseq
        %v565 = vshrl.u32 %v564, 7
        %567 = vset.pattern.permute.xlu0 %v565
        %568 = vperm.xlu0 %567, %v563
        %v569 = vpop.permute.xlu0 %568
        %v570 = vlaneseq
        %v571 = vshrl.u32 %v570, 7
        %v572 = vadd.s32 %v571, 8
        %573 = vset.pattern.permute.xlu0 %v572
        %574 = vperm.xlu0 %573, %v563
        %v575 = vpop.permute.xlu0 %574
        %v576 = vperm.slane %v440, 1
        %v577 = vlaneseq
        %v578 = vshrl.u32 %v577, 7
        %580 = vset.pattern.permute.xlu0 %v578
        %581 = vperm.xlu0 %580, %v576
        %v582 = vpop.permute.xlu0 %581
        %v583 = vlaneseq
        %v584 = vshrl.u32 %v583, 7
        %v585 = vadd.s32 %v584, 8
        %586 = vset.pattern.permute.xlu0 %v585
        %587 = vperm.xlu0 %586, %v576
        %v588 = vpop.permute.xlu0 %587
        %v589 = vperm.slane %v440, 2
        %v590 = vlaneseq
        %v591 = vshrl.u32 %v590, 7
        %593 = vset.pattern.permute.xlu0 %v591
        %594 = vperm.xlu0 %593, %v589
        %v595 = vpop.permute.xlu0 %594
        %v596 = vlaneseq
        %v597 = vshrl.u32 %v596, 7
        %v598 = vadd.s32 %v597, 8
        %599 = vset.pattern.permute.xlu0 %v598
        %600 = vperm.xlu0 %599, %v589
        %v601 = vpop.permute.xlu0 %600
        %v602 = vperm.slane %v440, 3
        %v603 = vlaneseq
        %v604 = vshrl.u32 %v603, 7
        %606 = vset.pattern.permute.xlu0 %v604
        %607 = vperm.xlu0 %606, %v602
        %v608 = vpop.permute.xlu0 %607
        %v609 = vlaneseq
        %v610 = vshrl.u32 %v609, 7
        %v611 = vadd.s32 %v610, 8
        %612 = vset.pattern.permute.xlu0 %v611
        %613 = vperm.xlu0 %612, %v602
        %v614 = vpop.permute.xlu0 %613
        %v615 = vperm.slane %v440, 4
        %v616 = vlaneseq
        %v617 = vshrl.u32 %v616, 7
        %619 = vset.pattern.permute.xlu0 %v617
        %620 = vperm.xlu0 %619, %v615
        %v621 = vpop.permute.xlu0 %620
        %v622 = vlaneseq
        %v623 = vshrl.u32 %v622, 7
        %v624 = vadd.s32 %v623, 8
        %625 = vset.pattern.permute.xlu0 %v624
        %626 = vperm.xlu0 %625, %v615
        %v627 = vpop.permute.xlu0 %626
        %v628 = vperm.slane %v440, 5
        %v629 = vlaneseq
        %v630 = vshrl.u32 %v629, 7
        %632 = vset.pattern.permute.xlu0 %v630
        %633 = vperm.xlu0 %632, %v628
        %v634 = vpop.permute.xlu0 %633
        %v635 = vlaneseq
        %v636 = vshrl.u32 %v635, 7
        %v637 = vadd.s32 %v636, 8
        %638 = vset.pattern.permute.xlu0 %v637
        %639 = vperm.xlu0 %638, %v628
        %v640 = vpop.permute.xlu0 %639
        %v641 = vperm.slane %v440, 6
        %v642 = vlaneseq
        %v643 = vshrl.u32 %v642, 7
        %645 = vset.pattern.permute.xlu0 %v643
        %646 = vperm.xlu0 %645, %v641
        %v647 = vpop.permute.xlu0 %646
        %v648 = vlaneseq
        %v649 = vshrl.u32 %v648, 7
        %v650 = vadd.s32 %v649, 8
        %651 = vset.pattern.permute.xlu0 %v650
        %652 = vperm.xlu0 %651, %v641
        %v653 = vpop.permute.xlu0 %652
        %v654 = vperm.slane %v440, 7
        %v655 = vlaneseq
        %v656 = vshrl.u32 %v655, 7
        %658 = vset.pattern.permute.xlu0 %v656
        %659 = vperm.xlu0 %658, %v654
        %v660 = vpop.permute.xlu0 %659
        %v661 = vlaneseq
        %v662 = vshrl.u32 %v661, 7
        %v663 = vadd.s32 %v662, 8
        %664 = vset.pattern.permute.xlu0 %v663
        %665 = vperm.xlu0 %664, %v654
        %v666 = vpop.permute.xlu0 %665
        %v667 = vsel %vm547, %v569, 0.0
        %v668 = vsel %vm548, %v575, 0.0
        %v669 = vsel %vm549, %v582, 0.0
        %v670 = vsel %vm550, %v588, 0.0
        %v671 = vsel %vm551, %v595, 0.0
        %v672 = vsel %vm552, %v601, 0.0
        %v673 = vsel %vm553, %v608, 0.0
        %v674 = vsel %vm554, %v614, 0.0
        %v675 = vsel %vm555, %v621, 0.0
        %v676 = vsel %vm556, %v627, 0.0
        %v677 = vsel %vm557, %v634, 0.0
        %v678 = vsel %vm558, %v640, 0.0
        %v679 = vsel %vm559, %v647, 0.0
        %v680 = vsel %vm560, %v653, 0.0
        %v681 = vsel %vm561, %v660, 0.0
        %v682 = vsel %vm562, %v666, 0.0
        %vm683 = vcmask 523264
        %v684 = vsel %vm683, %v667, 0.0
        %v685 = vsel %vm683, %v668, 0.0
        %v686 = vadd.f32 %v684, %v685
        %v687 = vrot.slane %v686, 4
        %v688 = vadd.f32 %v686, %v687
        %v689 = vrot.slane %v688, 2
        %v690 = vadd.f32 %v688, %v689
        %v691 = vrot.slane %v690, 1
        %v692 = vadd.f32 %v690, %v691
        %v693 = vsel %vm683, %v669, 0.0
        %v694 = vsel %vm683, %v670, 0.0
        %v695 = vadd.f32 %v693, %v694
        %v696 = vrot.slane %v695, 4
        %v697 = vadd.f32 %v695, %v696
        %v698 = vrot.slane %v697, 2
        %v699 = vadd.f32 %v697, %v698
        %v700 = vrot.slane %v699, 1
        %v701 = vadd.f32 %v699, %v700
        %v702 = vsel %vm683, %v671, 0.0
        %v703 = vsel %vm683, %v672, 0.0
        %v704 = vadd.f32 %v702, %v703
        %v705 = vrot.slane %v704, 4
        %v706 = vadd.f32 %v704, %v705
        %v707 = vrot.slane %v706, 2
        %v708 = vadd.f32 %v706, %v707
        %v709 = vrot.slane %v708, 1
        %v710 = vadd.f32 %v708, %v709
        %v711 = vsel %vm683, %v673, 0.0
        %v712 = vsel %vm683, %v674, 0.0
        %v713 = vadd.f32 %v711, %v712
        %v714 = vrot.slane %v713, 4
        %v715 = vadd.f32 %v713, %v714
        %v716 = vrot.slane %v715, 2
        %v717 = vadd.f32 %v715, %v716
        %v718 = vrot.slane %v717, 1
        %v719 = vadd.f32 %v717, %v718
        %v720 = vsel %vm683, %v675, 0.0
        %v721 = vsel %vm683, %v676, 0.0
        %v722 = vadd.f32 %v720, %v721
        %v723 = vrot.slane %v722, 4
        %v724 = vadd.f32 %v722, %v723
        %v725 = vrot.slane %v724, 2
        %v726 = vadd.f32 %v724, %v725
        %v727 = vrot.slane %v726, 1
        %v728 = vadd.f32 %v726, %v727
        %v729 = vsel %vm683, %v677, 0.0
        %v730 = vsel %vm683, %v678, 0.0
        %v731 = vadd.f32 %v729, %v730
        %v732 = vrot.slane %v731, 4
        %v733 = vadd.f32 %v731, %v732
        %v734 = vrot.slane %v733, 2
        %v735 = vadd.f32 %v733, %v734
        %v736 = vrot.slane %v735, 1
        %v737 = vadd.f32 %v735, %v736
        %v738 = vsel %vm683, %v679, 0.0
        %v739 = vsel %vm683, %v680, 0.0
        %v740 = vadd.f32 %v738, %v739
        %v741 = vrot.slane %v740, 4
        %v742 = vadd.f32 %v740, %v741
        %v743 = vrot.slane %v742, 2
        %v744 = vadd.f32 %v742, %v743
        %v745 = vrot.slane %v744, 1
        %v746 = vadd.f32 %v744, %v745
        %v747 = vsel %vm683, %v681, 0.0
        %v748 = vsel %vm683, %v682, 0.0
        %v749 = vadd.f32 %v747, %v748
        %v750 = vrot.slane %v749, 4
        %v751 = vadd.f32 %v749, %v750
        %v752 = vrot.slane %v751, 2
        %v753 = vadd.f32 %v751, %v752
        %v754 = vrot.slane %v753, 1
        %v755 = vadd.f32 %v753, %v754
        %vm764 = vcmask 1041409
        %v765 = vsel %vm764, %v701, %v692
        %vm766 = vcmask 1042434
        %v767 = vsel %vm766, %v710, %v765
        %vm768 = vcmask 1043459
        %v769 = vsel %vm768, %v719, %v767
        %vm770 = vcmask 1044484
        %v771 = vsel %vm770, %v728, %v769
        %vm772 = vcmask 1045509
        %v773 = vsel %vm772, %v737, %v771
        %vm774 = vcmask 1046534
        %v775 = vsel %vm774, %v746, %v773
        %vm776 = vcmask 1047559
        %v777 = vsel %vm776, %v755, %v775
        %779 = vst.msk [vmem:[#allocation2] sm:$0xff] %vm683, %v777
        %v780 = vld [vmem:[%s369] sm:$0xff]
        %v781 = vld [vmem:[%s379] sm:$0xff]
        %v782 = vsel %vm434, %v781, 0.0
        %783 = vadd.xlane.f32.xlu0 %v782
        %v784 = vpop.xlane.xlu0 %783
        %v785 = vmax.f32 %v784, 1.0
        %v786 = vrcp.pop %v785
        %v787 = vmul.f32 %v781, %v786
        %v788 = vperm.slane %v780, 0
        %v789 = vlaneseq
        %v790 = vshrl.u32 %v789, 7
        %792 = vset.pattern.permute.xlu0 %v790
        %793 = vperm.xlu0 %792, %v788
        %v794 = vpop.permute.xlu0 %793
        %v795 = vlaneseq
        %v796 = vshrl.u32 %v795, 7
        %v797 = vadd.s32 %v796, 8
        %798 = vset.pattern.permute.xlu0 %v797
        %799 = vperm.xlu0 %798, %v788
        %v800 = vpop.permute.xlu0 %799
        %v801 = vperm.slane %v780, 1
        %v802 = vlaneseq
        %v803 = vshrl.u32 %v802, 7
        %805 = vset.pattern.permute.xlu0 %v803
        %806 = vperm.xlu0 %805, %v801
        %v807 = vpop.permute.xlu0 %806
        %v808 = vlaneseq
        %v809 = vshrl.u32 %v808, 7
        %v810 = vadd.s32 %v809, 8
        %811 = vset.pattern.permute.xlu0 %v810
        %812 = vperm.xlu0 %811, %v801
        %v813 = vpop.permute.xlu0 %812
        %v814 = vperm.slane %v780, 2
        %v815 = vlaneseq
        %v816 = vshrl.u32 %v815, 7
        %818 = vset.pattern.permute.xlu0 %v816
        %819 = vperm.xlu0 %818, %v814
        %v820 = vpop.permute.xlu0 %819
        %v821 = vlaneseq
        %v822 = vshrl.u32 %v821, 7
        %v823 = vadd.s32 %v822, 8
        %824 = vset.pattern.permute.xlu0 %v823
        %825 = vperm.xlu0 %824, %v814
        %v826 = vpop.permute.xlu0 %825
        %v827 = vperm.slane %v780, 3
        %v828 = vlaneseq
        %v829 = vshrl.u32 %v828, 7
        %831 = vset.pattern.permute.xlu0 %v829
        %832 = vperm.xlu0 %831, %v827
        %v833 = vpop.permute.xlu0 %832
        %v834 = vlaneseq
        %v835 = vshrl.u32 %v834, 7
        %v836 = vadd.s32 %v835, 8
        %837 = vset.pattern.permute.xlu0 %v836
        %838 = vperm.xlu0 %837, %v827
        %v839 = vpop.permute.xlu0 %838
        %v840 = vperm.slane %v780, 4
        %v841 = vlaneseq
        %v842 = vshrl.u32 %v841, 7
        %844 = vset.pattern.permute.xlu0 %v842
        %845 = vperm.xlu0 %844, %v840
        %v846 = vpop.permute.xlu0 %845
        %v847 = vlaneseq
        %v848 = vshrl.u32 %v847, 7
        %v849 = vadd.s32 %v848, 8
        %850 = vset.pattern.permute.xlu0 %v849
        %851 = vperm.xlu0 %850, %v840
        %v852 = vpop.permute.xlu0 %851
        %v853 = vperm.slane %v780, 5
        %v854 = vlaneseq
        %v855 = vshrl.u32 %v854, 7
        %857 = vset.pattern.permute.xlu0 %v855
        %858 = vperm.xlu0 %857, %v853
        %v859 = vpop.permute.xlu0 %858
        %v860 = vlaneseq
        %v861 = vshrl.u32 %v860, 7
        %v862 = vadd.s32 %v861, 8
        %863 = vset.pattern.permute.xlu0 %v862
        %864 = vperm.xlu0 %863, %v853
        %v865 = vpop.permute.xlu0 %864
        %v866 = vperm.slane %v780, 6
        %v867 = vlaneseq
        %v868 = vshrl.u32 %v867, 7
        %870 = vset.pattern.permute.xlu0 %v868
        %871 = vperm.xlu0 %870, %v866
        %v872 = vpop.permute.xlu0 %871
        %v873 = vlaneseq
        %v874 = vshrl.u32 %v873, 7
        %v875 = vadd.s32 %v874, 8
        %876 = vset.pattern.permute.xlu0 %v875
        %877 = vperm.xlu0 %876, %v866
        %v878 = vpop.permute.xlu0 %877
        %v879 = vperm.slane %v780, 7
        %v880 = vlaneseq
        %v881 = vshrl.u32 %v880, 7
        %883 = vset.pattern.permute.xlu0 %v881
        %884 = vperm.xlu0 %883, %v879
        %v885 = vpop.permute.xlu0 %884
        %v886 = vlaneseq
        %v887 = vshrl.u32 %v886, 7
        %v888 = vadd.s32 %v887, 8
        %889 = vset.pattern.permute.xlu0 %v888
        %890 = vperm.xlu0 %889, %v879
        %v891 = vpop.permute.xlu0 %890
        %vm892 = vcmp.eq.s32.totalorder %v794, %v442
        %vm893 = vcmp.eq.s32.totalorder %v800, %v442
        %vm894 = vcmp.eq.s32.totalorder %v807, %v442
        %vm895 = vcmp.eq.s32.totalorder %v813, %v442
        %vm896 = vcmp.eq.s32.totalorder %v820, %v442
        %vm897 = vcmp.eq.s32.totalorder %v826, %v442
        %vm898 = vcmp.eq.s32.totalorder %v833, %v442
        %vm899 = vcmp.eq.s32.totalorder %v839, %v442
        %vm900 = vcmp.eq.s32.totalorder %v846, %v442
        %vm901 = vcmp.eq.s32.totalorder %v852, %v442
        %vm902 = vcmp.eq.s32.totalorder %v859, %v442
        %vm903 = vcmp.eq.s32.totalorder %v865, %v442
        %vm904 = vcmp.eq.s32.totalorder %v872, %v442
        %vm905 = vcmp.eq.s32.totalorder %v878, %v442
        %vm906 = vcmp.eq.s32.totalorder %v885, %v442
        %vm907 = vcmp.eq.s32.totalorder %v891, %v442
        %v908 = vperm.slane %v787, 0
        %v909 = vlaneseq
        %v910 = vshrl.u32 %v909, 7
        %912 = vset.pattern.permute.xlu0 %v910
        %913 = vperm.xlu0 %912, %v908
        %v914 = vpop.permute.xlu0 %913
        %v915 = vlaneseq
        %v916 = vshrl.u32 %v915, 7
        %v917 = vadd.s32 %v916, 8
        %918 = vset.pattern.permute.xlu0 %v917
        %919 = vperm.xlu0 %918, %v908
        %v920 = vpop.permute.xlu0 %919
        %v921 = vperm.slane %v787, 1
        %v922 = vlaneseq
        %v923 = vshrl.u32 %v922, 7
        %925 = vset.pattern.permute.xlu0 %v923
        %926 = vperm.xlu0 %925, %v921
        %v927 = vpop.permute.xlu0 %926
        %v928 = vlaneseq
        %v929 = vshrl.u32 %v928, 7
        %v930 = vadd.s32 %v929, 8
        %931 = vset.pattern.permute.xlu0 %v930
        %932 = vperm.xlu0 %931, %v921
        %v933 = vpop.permute.xlu0 %932
        %v934 = vperm.slane %v787, 2
        %v935 = vlaneseq
        %v936 = vshrl.u32 %v935, 7
        %938 = vset.pattern.permute.xlu0 %v936
        %939 = vperm.xlu0 %938, %v934
        %v940 = vpop.permute.xlu0 %939
        %v941 = vlaneseq
        %v942 = vshrl.u32 %v941, 7
        %v943 = vadd.s32 %v942, 8
        %944 = vset.pattern.permute.xlu0 %v943
        %945 = vperm.xlu0 %944, %v934
        %v946 = vpop.permute.xlu0 %945
        %v947 = vperm.slane %v787, 3
        %v948 = vlaneseq
        %v949 = vshrl.u32 %v948, 7
        %951 = vset.pattern.permute.xlu0 %v949
        %952 = vperm.xlu0 %951, %v947
        %v953 = vpop.permute.xlu0 %952
        %v954 = vlaneseq
        %v955 = vshrl.u32 %v954, 7
        %v956 = vadd.s32 %v955, 8
        %957 = vset.pattern.permute.xlu0 %v956
        %958 = vperm.xlu0 %957, %v947
        %v959 = vpop.permute.xlu0 %958
        %v960 = vperm.slane %v787, 4
        %v961 = vlaneseq
        %v962 = vshrl.u32 %v961, 7
        %964 = vset.pattern.permute.xlu0 %v962
        %965 = vperm.xlu0 %964, %v960
        %v966 = vpop.permute.xlu0 %965
        %v967 = vlaneseq
        %v968 = vshrl.u32 %v967, 7
        %v969 = vadd.s32 %v968, 8
        %970 = vset.pattern.permute.xlu0 %v969
        %971 = vperm.xlu0 %970, %v960
        %v972 = vpop.permute.xlu0 %971
        %v973 = vperm.slane %v787, 5
        %v974 = vlaneseq
        %v975 = vshrl.u32 %v974, 7
        %977 = vset.pattern.permute.xlu0 %v975
        %978 = vperm.xlu0 %977, %v973
        %v979 = vpop.permute.xlu0 %978
        %v980 = vlaneseq
        %v981 = vshrl.u32 %v980, 7
        %v982 = vadd.s32 %v981, 8
        %983 = vset.pattern.permute.xlu0 %v982
        %984 = vperm.xlu0 %983, %v973
        %v985 = vpop.permute.xlu0 %984
        %v986 = vperm.slane %v787, 6
        %v987 = vlaneseq
        %v988 = vshrl.u32 %v987, 7
        %990 = vset.pattern.permute.xlu0 %v988
        %991 = vperm.xlu0 %990, %v986
        %v992 = vpop.permute.xlu0 %991
        %v993 = vlaneseq
        %v994 = vshrl.u32 %v993, 7
        %v995 = vadd.s32 %v994, 8
        %996 = vset.pattern.permute.xlu0 %v995
        %997 = vperm.xlu0 %996, %v986
        %v998 = vpop.permute.xlu0 %997
        %v999 = vperm.slane %v787, 7
        %v1000 = vlaneseq
        %v1001 = vshrl.u32 %v1000, 7
        %1003 = vset.pattern.permute.xlu0 %v1001
        %1004 = vperm.xlu0 %1003, %v999
        %v1005 = vpop.permute.xlu0 %1004
        %v1006 = vlaneseq
        %v1007 = vshrl.u32 %v1006, 7
        %v1008 = vadd.s32 %v1007, 8
        %1009 = vset.pattern.permute.xlu0 %v1008
        %1010 = vperm.xlu0 %1009, %v999
        %v1011 = vpop.permute.xlu0 %1010
        %v1012 = vsel %vm892, %v914, 0.0
        %v1013 = vsel %vm893, %v920, 0.0
        %v1014 = vsel %vm894, %v927, 0.0
        %v1015 = vsel %vm895, %v933, 0.0
        %v1016 = vsel %vm896, %v940, 0.0
        %v1017 = vsel %vm897, %v946, 0.0
        %v1018 = vsel %vm898, %v953, 0.0
        %v1019 = vsel %vm899, %v959, 0.0
        %v1020 = vsel %vm900, %v966, 0.0
        %v1021 = vsel %vm901, %v972, 0.0
        %v1022 = vsel %vm902, %v979, 0.0
        %v1023 = vsel %vm903, %v985, 0.0
        %v1024 = vsel %vm904, %v992, 0.0
        %v1025 = vsel %vm905, %v998, 0.0
        %v1026 = vsel %vm906, %v1005, 0.0
        %v1027 = vsel %vm907, %v1011, 0.0
        %v1028 = vsel %vm683, %v1012, 0.0
        %v1029 = vsel %vm683, %v1013, 0.0
        %v1030 = vadd.f32 %v1028, %v1029
        %v1031 = vrot.slane %v1030, 4
        %v1032 = vadd.f32 %v1030, %v1031
        %v1033 = vrot.slane %v1032, 2
        %v1034 = vadd.f32 %v1032, %v1033
        %v1035 = vrot.slane %v1034, 1
        %v1036 = vadd.f32 %v1034, %v1035
        %v1037 = vsel %vm683, %v1014, 0.0
        %v1038 = vsel %vm683, %v1015, 0.0
        %v1039 = vadd.f32 %v1037, %v1038
        %v1040 = vrot.slane %v1039, 4
        %v1041 = vadd.f32 %v1039, %v1040
        %v1042 = vrot.slane %v1041, 2
        %v1043 = vadd.f32 %v1041, %v1042
        %v1044 = vrot.slane %v1043, 1
        %v1045 = vadd.f32 %v1043, %v1044
        %v1046 = vsel %vm683, %v1016, 0.0
        %v1047 = vsel %vm683, %v1017, 0.0
        %v1048 = vadd.f32 %v1046, %v1047
        %v1049 = vrot.slane %v1048, 4
        %v1050 = vadd.f32 %v1048, %v1049
        %v1051 = vrot.slane %v1050, 2
        %v1052 = vadd.f32 %v1050, %v1051
        %v1053 = vrot.slane %v1052, 1
        %v1054 = vadd.f32 %v1052, %v1053
        %v1055 = vsel %vm683, %v1018, 0.0
        %v1056 = vsel %vm683, %v1019, 0.0
        %v1057 = vadd.f32 %v1055, %v1056
        %v1058 = vrot.slane %v1057, 4
        %v1059 = vadd.f32 %v1057, %v1058
        %v1060 = vrot.slane %v1059, 2
        %v1061 = vadd.f32 %v1059, %v1060
        %v1062 = vrot.slane %v1061, 1
        %v1063 = vadd.f32 %v1061, %v1062
        %v1064 = vsel %vm683, %v1020, 0.0
        %v1065 = vsel %vm683, %v1021, 0.0
        %v1066 = vadd.f32 %v1064, %v1065
        %v1067 = vrot.slane %v1066, 4
        %v1068 = vadd.f32 %v1066, %v1067
        %v1069 = vrot.slane %v1068, 2
        %v1070 = vadd.f32 %v1068, %v1069
        %v1071 = vrot.slane %v1070, 1
        %v1072 = vadd.f32 %v1070, %v1071
        %v1073 = vsel %vm683, %v1022, 0.0
        %v1074 = vsel %vm683, %v1023, 0.0
        %v1075 = vadd.f32 %v1073, %v1074
        %v1076 = vrot.slane %v1075, 4
        %v1077 = vadd.f32 %v1075, %v1076
        %v1078 = vrot.slane %v1077, 2
        %v1079 = vadd.f32 %v1077, %v1078
        %v1080 = vrot.slane %v1079, 1
        %v1081 = vadd.f32 %v1079, %v1080
        %v1082 = vsel %vm683, %v1024, 0.0
        %v1083 = vsel %vm683, %v1025, 0.0
        %v1084 = vadd.f32 %v1082, %v1083
        %v1085 = vrot.slane %v1084, 4
        %v1086 = vadd.f32 %v1084, %v1085
        %v1087 = vrot.slane %v1086, 2
        %v1088 = vadd.f32 %v1086, %v1087
        %v1089 = vrot.slane %v1088, 1
        %v1090 = vadd.f32 %v1088, %v1089
        %v1091 = vsel %vm683, %v1026, 0.0
        %v1092 = vsel %vm683, %v1027, 0.0
        %v1093 = vadd.f32 %v1091, %v1092
        %v1094 = vrot.slane %v1093, 4
        %v1095 = vadd.f32 %v1093, %v1094
        %v1096 = vrot.slane %v1095, 2
        %v1097 = vadd.f32 %v1095, %v1096
        %v1098 = vrot.slane %v1097, 1
        %v1099 = vadd.f32 %v1097, %v1098
        %v1108 = vsel %vm764, %v1045, %v1036
        %v1109 = vsel %vm766, %v1054, %v1108
        %v1110 = vsel %vm768, %v1063, %v1109
        %v1111 = vsel %vm770, %v1072, %v1110
        %v1112 = vsel %vm772, %v1081, %v1111
        %v1113 = vsel %vm774, %v1090, %v1112
        %v1114 = vsel %vm776, %v1099, %v1113
        %1116 = vst.msk [vmem:[#allocation2 + $0x8] sm:$0xff] %vm683, %v1114
        %v1117 = vld [vmem:[#allocation2] sm:$0xff]
        %v1118 = vld [vmem:[#allocation2 + $0x8] sm:$0xff]
        %v1119 = vld [vmem:[#allocation12] sm:$0xf]
        %v1120 = vld [vmem:[#allocation12 + $0x4] sm:$0xf]
        %v1121 = vld [vmem:[#allocation12 + $0x8] sm:$0xf]
        %v1122 = vld [vmem:[#allocation12 + $0xc] sm:$0xf]
        %v1123 = vld [vmem:[#allocation12 + $0x10] sm:$0xf]
        %v1124 = vld [vmem:[#allocation12 + $0x14] sm:$0xf]
        %v1125 = vld [vmem:[#allocation12 + $0x18] sm:$0xf]
        %v1126 = vld [vmem:[#allocation12 + $0x1c] sm:$0xf]
        %v1127 = vld [vmem:[#allocation13] sm:$0xf]
        %v1128 = vld [vmem:[#allocation13 + $0x4] sm:$0xf]
        %v1129 = vld [vmem:[#allocation13 + $0x8] sm:$0xf]
        %v1130 = vld [vmem:[#allocation13 + $0xc] sm:$0xf]
        %v1131 = vld [vmem:[#allocation13 + $0x10] sm:$0xf]
        %v1132 = vld [vmem:[#allocation13 + $0x14] sm:$0xf]
        %v1133 = vld [vmem:[#allocation13 + $0x18] sm:$0xf]
        %v1134 = vld [vmem:[#allocation13 + $0x1c] sm:$0xf]
        %v1135 = vld [vmem:[#allocation13 + $0x20] sm:$0xf]
        %v1136 = vld [vmem:[#allocation13 + $0x24] sm:$0xf]
        %v1137 = vld [vmem:[#allocation13 + $0x28] sm:$0xf]
        %v1138 = vld [vmem:[#allocation13 + $0x2c] sm:$0xf]
        %v1139 = vld [vmem:[#allocation13 + $0x30] sm:$0xf]
        %v1140 = vld [vmem:[#allocation13 + $0x34] sm:$0xf]
        %v1141 = vld [vmem:[#allocation13 + $0x38] sm:$0xf]
        %v1142 = vld [vmem:[#allocation13 + $0x3c] sm:$0xf]
        %v1143 = vld [vmem:[%s6] sm:$0x1]
        %v1144 = vpack.c.bf16 %v1118, %v1117
        %v1153 = vunpack.c.l.b16 %v1119
        %v1154 = vunpack.c.l.b16 %v1120
        %v1155 = vunpack.c.l.b16 %v1121
        %v1156 = vunpack.c.l.b16 %v1122
        %v1157 = vunpack.c.l.b16 %v1123
        %v1158 = vunpack.c.l.b16 %v1124
        %v1159 = vunpack.c.l.b16 %v1125
        %v1160 = vunpack.c.l.b16 %v1126
        %v1161 = vpack.c.b16 %v1154, %v1153
        %v1162 = vpack.c.b16 %v1156, %v1155
        %v1163 = vpack.c.b16 %v1158, %v1157
        %v1164 = vpack.c.b16 %v1160, %v1159
        %v1170 = vsel %vm683, %v1144, 0
        %1172 = vmatpush.bf16.msra.mxu0 0
        %1173 = vmatpush.bf16.msra.mxu0 0
        %1174 = vmatpush.bf16.msra.mxu0 0
        %1175 = vmatpush.bf16.msra.mxu0 0
        %1176 = vmatpush.bf16.msra.mxu0 %v1164
        %1177 = vmatpush.bf16.msra.mxu0 %v1163
        %1178 = vmatpush.bf16.msra.mxu0 %v1162
        %1179 = vmatpush.bf16.msra.mxu0 %v1161
        %1180 = vmatmul.bf16.gmra.mxu0 %v1170
        %v1181 = vpop.f32.mrf.mxu0
        %v1182 = vadd.f32 0.0, %v1181
        %v1183 = vpop.f32.mrf.mxu0
        %v1184 = vadd.f32 0.0, %v1183
        %1185 = vdwg.mxu0
        %v1186 = vpack.c.bf16 %v1184, %v1182
        %v1188 = vperm.slane %v1143, 0
        %v1206 = vunpack.c.l.b16 %v1127
        %v1207 = vunpack.c.l.b16 %v1128
        %v1208 = vunpack.c.l.b16 %v1129
        %v1209 = vunpack.c.l.b16 %v1130
        %v1210 = vunpack.c.l.b16 %v1131
        %v1211 = vunpack.c.l.b16 %v1132
        %v1212 = vunpack.c.l.b16 %v1133
        %v1213 = vunpack.c.l.b16 %v1134
        %v1214 = vunpack.c.l.b16 %v1135
        %v1215 = vunpack.c.l.b16 %v1136
        %v1216 = vunpack.c.l.b16 %v1137
        %v1217 = vunpack.c.l.b16 %v1138
        %v1218 = vunpack.c.l.b16 %v1139
        %v1219 = vunpack.c.l.b16 %v1140
        %v1220 = vunpack.c.l.b16 %v1141
        %v1221 = vunpack.c.l.b16 %v1142
        %v1222 = vpack.c.b16 %v1207, %v1206
        %v1223 = vpack.c.b16 %v1209, %v1208
        %v1224 = vpack.c.b16 %v1211, %v1210
        %v1225 = vpack.c.b16 %v1213, %v1212
        %v1226 = vpack.c.b16 %v1215, %v1214
        %v1227 = vpack.c.b16 %v1217, %v1216
        %v1228 = vpack.c.b16 %v1219, %v1218
        %v1229 = vpack.c.b16 %v1221, %v1220
        %1238 = vmatpush.bf16.msra.mxu0 %v1229
        %1239 = vmatpush.bf16.msra.mxu0 %v1228
        %1240 = vmatpush.bf16.msra.mxu0 %v1227
        %1241 = vmatpush.bf16.msra.mxu0 %v1226
        %1242 = vmatpush.bf16.msra.mxu0 %v1225
        %1243 = vmatpush.bf16.msra.mxu0 %v1224
        %1244 = vmatpush.bf16.msra.mxu0 %v1223
        %1245 = vmatpush.bf16.msra.mxu0 %v1222
        %1246 = vmatmul.bf16.gmra.mxu0 %v1186
        %v1247 = vpop.f32.mrf.mxu0
        %v1248 = vadd.f32 %v1188, %v1247
        %v1249 = vpop.f32.mrf.mxu0
        %v1250 = vadd.f32 %v1188, %v1249
        %1251 = vdwg.mxu0
        %vm1252 = vcmp.gt.f32.partialorder %v1248, 0.0
        %vm1253 = vcmp.gt.f32.partialorder %v1250, 0.0
        %v1254 = vmin.f32 %v1248, 0.0
        %v1255 = vmin.f32 %v1250, 0.0
        %v1256 = vmul.f32 %v1254, 1.442695
        %v1257 = vpow.pop %v1256
        %v1258 = vmul.f32 %v1255, 1.442695
        %v1259 = vpow.pop %v1258
        %v1260 = vsub.f32 %v1257, 1.0
        %v1261 = vsub.f32 %v1259, 1.0
        %v1262 = vsel %vm1252, %v1248, %v1260
        %v1263 = vsel %vm1253, %v1250, %v1261
        %s1264 = smul.u32 %s29, 8
        %s1265 = scalar_lea.vmem [#allocation3], %s1264
        %1266 = vst [vmem:[%s1265] sm:$0xff] %v1262
        %s1267 = sadd.s32 %s1264, 16
        %s1268 = scalar_lea.vmem [#allocation3], %s1267
        %1269 = vst [vmem:[%s1268] sm:$0xff] %v1263
        %p1270 = scmp.eq.s32.totalorder %s29, 1
        // Predicated region
        $region73: #{tpu_custom_call.1} parent=47 // pred_check
          %p1271 = pneg %p1270
        $region74: #{tpu_custom_call.1} parent=47 // pred_check_branch
          %1273 = sbr.rel (%p1271) target = $region76
        $region75: #{tpu_custom_call.1} parent=47 // pred_region
          %v1274 = vld [vmem:[#allocation3] sm:$0xff]
          %v1275 = vld [vmem:[#allocation3 + $0x8] sm:$0xff]
          %v1276 = vld [vmem:[#allocation3 + $0x10] sm:$0xff]
          %v1277 = vld [vmem:[#allocation3 + $0x18] sm:$0xff]
          %1278 = vmatpush.xpose.msra.mxu0 0.0
          %1279 = vmatpush.xpose.msra.mxu0 0.0
          %1280 = vmatpush.xpose.msra.mxu0 0.0
          %1281 = vmatpush.xpose.msra.mxu0 0.0
          %1282 = vmatpush.xpose.msra.mxu0 0.0
          %1283 = vmatpush.xpose.msra.mxu0 0.0
          %1284 = vmatpush.xpose.msra.mxu0 0.0
          %1285 = vmatpush.xpose.msra.mxu0 0.0
          %1286 = vmatpush.xpose.msra.mxu0 0.0
          %1287 = vmatpush.xpose.msra.mxu0 0.0
          %1288 = vmatpush.xpose.msra.mxu0 0.0
          %1289 = vmatpush.xpose.msra.mxu0 0.0
          %1290 = vmatpush.xpose.msra.mxu0 0.0
          %1291 = vmatpush.xpose.msra.mxu0 0.0
          %1292 = vmatpush.xpose.msra.mxu0 %v1277
          %1293 = vmatpush.xpose.msra.mxu0 %v1276
          %1294 = vmatmul.f32.gmra.mxu0 %v1274
          %v1295 = vpop.f32.mrf.mxu0
          %v1296 = vadd.f32 0.0, %v1295
          %1297 = vmatmul.f32.gmra.mxu0 %v1275
          %v1298 = vpop.f32.mrf.mxu0
          %v1299 = vadd.f32 0.0, %v1298
          %1300 = vdwg.mxu0
          %v1301 = vsel %vm434, %v1296, -inf
          %1302 = vmax.xlane.f32.xlu0 %v1301
          %v1303 = vpop.xlane.xlu0 %1302
          %v1304 = vsel %vm434, %v1299, -inf
          %1305 = vmax.xlane.f32.xlu0 %v1304
          %v1306 = vpop.xlane.xlu0 %1305
          %v1307 = vsub.f32 %v1296, %v1303
          %v1308 = vsub.f32 %v1299, %v1306
          %v1309 = vmul.f32 %v1307, 1.442695
          %v1310 = vpow.pop %v1309
          %v1311 = vmul.f32 %v1308, 1.442695
          %v1312 = vpow.pop %v1311
          %v1313 = vsel %vm434, %v1310, 0.0
          %1314 = vadd.xlane.f32.xlu0 %v1313
          %v1315 = vpop.xlane.xlu0 %1314
          %v1316 = vsel %vm434, %v1312, 0.0
          %1317 = vadd.xlane.f32.xlu0 %v1316
          %v1318 = vpop.xlane.xlu0 %1317
          %v1319 = vlog2.pop %v1315
          %v1320 = vmul.f32 %v1319, 0.6931472
          %v1321 = vlog2.pop %v1318
          %v1322 = vmul.f32 %v1321, 0.6931472
          %v1323 = vadd.f32 %v1303, %v1320
          %v1324 = vadd.f32 %v1306, %v1322
          %v1325 = vlaneseq
          %v1326 = vshrl.u32 %v1325, 7
          %v1327 = vadd.s32 %v1326, 8
          %vm1328 = vcmp.eq.s32.totalorder %v1326, %v442
          %vm1329 = vcmp.eq.s32.totalorder %v1327, %v442
          %v1330 = vsel %vm1328, %v1296, 0.0
          %v1331 = vsel %vm1329, %v1299, 0.0
          %v1332 = vsel %vm434, %v1330, 0.0
          %1333 = vadd.xlane.f32.xlu0 %v1332
          %v1334 = vpop.xlane.xlu0 %1333
          %v1335 = vsel %vm434, %v1331, 0.0
          %1336 = vadd.xlane.f32.xlu0 %v1335
          %v1337 = vpop.xlane.xlu0 %1336
          %v1338 = vsub.f32 %v1323, %v1334
          %v1339 = vsub.f32 %v1324, %v1337
          %vm1340 = vcmask 7168
          %v1341 = vsel %vm1340, %v1338, 0.0
          %v1342 = vsel %vm1340, %v1339, 0.0
          %v1343 = vadd.f32 %v1341, %v1342
          %1344 = vadd.xlane.f32.xlu0 %v1343
          %v1345 = vpop.xlane.xlu0 %1344
          %v1346 = vrot.slane %v1345, 4
          %v1347 = vadd.f32 %v1345, %v1346
          %v1348 = vrot.slane %v1347, 2
          %v1349 = vadd.f32 %v1347, %v1348
          %v1350 = vrot.slane %v1349, 1
          %v1351 = vadd.f32 %v1349, %v1350
          %s1352 = vtos %v1351
          %v1353 = vrcp.pop 16.0
          %v1354 = vmul.f32 16.0, %v1353
          %v1355 = vsub.f32 1.0, %v1354
          %v1356 = vmul.f32 %v1353, %v1355
          %v1357 = vadd.f32 %v1353, %v1356
          %vm1358 = vweird.f32 %v1353
          %v1359 = vsel %vm1358, %v1353, %v1357
          %s1360 = vtos %v1359
          %s1361 = smul.f32 %s1352, %s1360
          %s1362 = scalar_lea.smem [#allocation15], 0
          %1363 = sst [smem:[%s1362]] %s1361
        $region76: #{tpu_custom_call.1} parent=47 // pred_fallthru
          _
        // Predicated region
        $region77: #{tpu_custom_call.1} parent=47 // pred_check
          %p1364 = pneg %p209
        $region78: #{tpu_custom_call.1} parent=47 // pred_check_branch
          %1366 = sbr.rel (%p1364) target = $region80
        $region79: #{tpu_custom_call.1} parent=47 // pred_region
          %1368 = vsyncadd [#allocation6], 0
          %s1370 = sshll.u32 %s7, 4
          %s1371 = int_to_ptr.hbm [resolvable:$true] %s1370
          %1373 = dma.smem_to_hbm [#allocation15], 16, %s1371, [#allocation6]
        $region80: #{tpu_custom_call.1} parent=47 // pred_fallthru
          _
        // Predicated region
        $region81: #{tpu_custom_call.1} parent=47 // pred_check
          %p1374 = pneg %p209
        $region82: #{tpu_custom_call.1} parent=47 // pred_check_branch
          %1376 = sbr.rel (%p1374) target = $region84
        $region83: #{tpu_custom_call.1} parent=47 // pred_region
          %1378 = dma.done [#allocation6], 16
        $region84: #{tpu_custom_call.1} parent=47 // pred_fallthru
          _
        %1379 = sfence
      $region48: #{tpu_custom_call.1} parent=5 // pred_fallthru
        _
      %p1380 = scmp.le.s32.totalorder 2, %s24
      // Predicated region
      $region85: #{tpu_custom_call.1} parent=5 // pred_check
        %p1381 = pneg %p1380
      $region86: #{tpu_custom_call.1} parent=5 // pred_check_branch
        %1383 = sbr.rel (%p1381) target = $region88
      $region87: #{tpu_custom_call.1} parent=5 // pred_region
        %s1384 = ssub.s32 %s24, 2
      $region88: #{tpu_custom_call.1} parent=5 // pred_fallthru
        _
    $region6: #{tpu_custom_call.1} parent=1 // loop_footer
      %s28 = sadd.s32 1, %s24
    $region7: #{tpu_custom_call.1} parent=1 // loop_footer_branch
      %23 = sbr.rel target = $region3
    $region8: #{tpu_custom_call.1} parent=1 // loop_exit
      _
    %1385 = vsyncpa [#allocation5], 1
    %s1386 = scalar_lea.sflag [#allocation5], 1
    %1387 = vsyncpa %s1386, 1
    %1388 = vsyncpa [#allocation8], 1
    %s1389 = scalar_lea.sflag [#allocation8], 1
    %1390 = vsyncpa %s1389, 1
    %1391 = vsyncpa [#allocation11], 1
    %s1392 = scalar_lea.sflag [#allocation11], 1
    %1393 = vsyncpa %s1392, 1
    %1394 = vsyncpa [#allocation14], 1
    %1395 = vsyncpa [#allocation6], 1
    %s1396 = scalar_lea.sflag [#allocation6], 1
    %1397 = vsyncpa %s1396, 1

</llo_original>
